<compile_context>
chip_gen: v6e
topology: v6e:2x2x1
jax: 0.10.0
libtpu: 0.0.40
codegen_flags: <defaults>
</compile_context>

<pallas_src>
import jax
import jax.numpy as jnp
from jax.experimental import pallas as pl
from jax.experimental.pallas import tpu as pltpu


# ----------------------------------------------------------------------------------------
# Fused decode kernel: grid = (iter_times - 1,), decode axis "arbitrary" (carried state)
# ----------------------------------------------------------------------------------------
def _graph_decode_kernel(
    # inputs (all VMEM-resident, loaded once)
    mlp_ref, init_oh_ref,
    wimg_ref, bimg_ref, wroot_ref, broot_ref,
    wd1a_ref, wd1b_ref, bd1_ref, wd2_ref, bd2_ref, dis_tab_ref,
    wr1a_ref, wr1b_ref, wr1c_ref, br1_ref, wr2_ref, br2_ref,
    words_ref, adjm_ref,
    # outputs (one block per decode step)
    widx_ref, dist_ref,
    # scratch (persists across decode steps)
    img_de_scr, oh_scr,
):
    f32 = jnp.float32
    t = pl.program_id(0)

    # ---------------- step-0 prologue: loop-invariant work + carried-state init ----------
    @pl.when(t == 0)
    def _init():
        # IMGdedimension(mlp_out): invariant across all decode steps -> compute once.
        img_de_scr[...] = (jnp.dot(mlp_ref[...], wimg_ref[...], preferred_element_type=f32)
                           + bimg_ref[...])
        # carried state = one-hot of the current node index (starts at root_node_idx)
        oh_scr[...] = init_oh_ref[...]

    oh = oh_scr[...]               # (B, V) one-hot of the current node
    img_de = img_de_scr[...]       # (B, C)

    # Data-dependent row gathers as one-hot MXU matmuls against VMEM-resident tables:
    #   words_embeddings[cur]  and  (adjacent_words_embedding[cur] < 1e-4) gate mask row.
    root_emb = jnp.dot(oh, words_ref[...], preferred_element_type=f32)      # (B, E)
    mask_row = jnp.dot(oh, adjm_ref[...], preferred_element_type=f32)       # (B, V), exact 0/1
    flag = jnp.where(mask_row >= 0.5, f32(1e-5), f32(1.0))

    # ROOTupdimension(root_emb). root_input = cat([root_up, img_de]) is never materialized:
    # the following Linears use pre-split weight slices (avoids lane-axis concatenates).
    root_up = jnp.dot(root_emb, wroot_ref[...], preferred_element_type=f32) + broot_ref[...]

    # distance_2_1: Linear -> ReLU -> Linear  (trailing Softmax dropped: argmax unchanged)
    dh = jnp.maximum(
        jnp.dot(root_up, wd1a_ref[...], preferred_element_type=f32)
        + jnp.dot(img_de, wd1b_ref[...], preferred_element_type=f32)
        + bd1_ref[...],
        0.0)
    dlog = jnp.dot(dh, wd2_ref[...], preferred_element_type=f32) + bd2_ref[...]   # (B, DS)
    dmax = jnp.max(dlog, axis=1, keepdims=True)
    dcol = jax.lax.broadcasted_iota(jnp.int32, dlog.shape, 1)
    didx = jnp.min(jnp.where(dlog == dmax, dcol, dlog.shape[1]),
                   axis=1, keepdims=True)                                   # first-max tie-break

    # dis_embeddings(distance_idx) as a one-hot matmul (small, VMEM-resident table)
    d_oh = (jax.lax.broadcasted_iota(
        jnp.int32, (didx.shape[0], dis_tab_ref.shape[0]), 1) == didx).astype(f32)
    dist_e = jnp.dot(d_oh, dis_tab_ref[...], preferred_element_type=f32)    # (B, E)
    dist_ref[0] = dist_e

    # relatedWordsClassifier: Linear (+ folded eval-BatchNorm2d) -> ReLU -> (Dropout=id) ->
    # Linear(bf16, full V in one shot) ; Softmax dropped (argmax unchanged).
    h = (jnp.dot(root_up, wr1a_ref[...], preferred_element_type=f32)
         + jnp.dot(img_de, wr1b_ref[...], preferred_element_type=f32)
         + jnp.dot(dist_e, wr1c_ref[...], preferred_element_type=f32)
         + br1_ref[...])
    h = jnp.maximum(h, 0.0).astype(wr2_ref.dtype)
    logits = jnp.dot(h, wr2_ref[...], preferred_element_type=f32) + br2_ref[...]  # (B, V)
    scaled = logits * flag

    smax = jnp.max(scaled, axis=1, keepdims=True)
    col = jax.lax.broadcasted_iota(jnp.int32, scaled.shape, 1)
    widx = jnp.min(jnp.where(scaled == smax, col, scaled.shape[1]),
                   axis=1, keepdims=True)                                   # (B, 1) int32
    widx_ref[0] = widx

    # carry the chosen node to the next decode step
    oh_scr[...] = (col == widx).astype(f32)


def _build_decode_call(B, C, E, Hd, DS, H2, V, T):
    def inv(shape):
        n = len(shape)
        return pl.BlockSpec(shape, lambda t, n=n: (0,) * n)   # invariant -> loaded once

    grid_spec = pltpu.PrefetchScalarGridSpec(
        num_scalar_prefetch=0,
        grid=(T,),
        in_specs=[
            inv((B, C)),        # mlp_out
            inv((B, V)),        # initial one-hot of root_node_idx
            inv((C, C)),        # IMGdedimension weight
            inv((1, C)),        # IMGdedimension bias
            inv((E, E)),        # ROOTupdimension weight
            inv((1, E)),        # ROOTupdimension bias
            inv((E, Hd)),       # distance Linear1 (root_up slice)
            inv((C, Hd)),       # distance Linear1 (img slice)
            inv((1, Hd)),       # distance Linear1 bias
            inv((Hd, DS)),      # distance Linear2 weight
            inv((1, DS)),       # distance Linear2 bias
            inv((DS, E)),       # dis_embeddings table
            inv((E, H2)),       # classifier Linear1 (root_up slice, BN folded)
            inv((C, H2)),       # classifier Linear1 (img slice)
            inv((E, H2)),       # classifier Linear1 (dist slice)
            inv((1, H2)),       # classifier Linear1 bias (BN folded)
            inv((H2, V)),       # classifier Linear2 weight, bf16, VMEM-resident
            inv((1, V)),        # classifier Linear2 bias
            inv((V, E)),        # words_embeddings table
            inv((V, V)),        # adjacency gate mask (0/1), precomputed
        ],
        out_specs=[
            pl.BlockSpec((1, B, 1), lambda t: (t, 0, 0)),      # selected word index per step
            pl.BlockSpec((1, B, E), lambda t: (t, 0, 0)),      # distance embedding per step
        ],
        scratch_shapes=[
            pltpu.VMEM((B, C), jnp.float32),                   # img_de (computed at step 0)
            pltpu.VMEM((B, V), jnp.float32),                   # carried one-hot of cur node
        ],
    )
    return pl.pallas_call(
        _graph_decode_kernel,
        grid_spec=grid_spec,
        out_shape=(jax.ShapeDtypeStruct((T, B, 1), jnp.int32),
                   jax.ShapeDtypeStruct((T, B, E), jnp.float32)),
        compiler_params=pltpu.CompilerParams(
            dimension_semantics=("arbitrary",),                # sequential decode, carried scratch
            vmem_limit_bytes=32 * 1024 * 1024),                # working set < 1 MiB; safe on v7x too
    )


# ----------------------------------------------------------------------------------------
# Wrapper: one kernel launch for the whole decode
# ----------------------------------------------------------------------------------------
def make_graph_encoding_forward(iter_times):
    def forward(root_node_idx, mlp_out, p):
        B, C = mlp_out.shape
        E = p["w_root"].shape[0]
        Hd = p["w_d1a"].shape[1]
        DS = p["w_d2"].shape[1]
        H2 = p["w_r1a"].shape[1]
        V = p["w_r2"].shape[1]
        T = iter_times - 1
        call = _build_decode_call(B, C, E, Hd, DS, H2, V, T)

        init_oh = (root_node_idx.astype(jnp.int32)[:, None]
                   == jnp.arange(V, dtype=jnp.int32)[None, :]).astype(jnp.float32)
        widx, dist = call(
            mlp_out, init_oh,
            p["w_img"], p["b_img"], p["w_root"], p["b_root"],
            p["w_d1a"], p["w_d1b"], p["b_d1"], p["w_d2"], p["b_d2"], p["dis_emb"],
            p["w_r1a"], p["w_r1b"], p["w_r1c"], p["b_r1"], p["w_r2"], p["b_r2"],
            p["words_emb"], p["adj_mask"])
        # PyTorch returns (root_node_idxs[:, 1:], distance_embedding_from_ck[:, 1:])
        return jnp.transpose(widx[:, :, 0]), jnp.transpose(dist, (1, 0, 2))
    return forward


# ----------------------------------------------------------------------------------------
# Parameters (deterministic), eval-mode BatchNorm fold + weight splitting for the kernel
# ----------------------------------------------------------------------------------------
def init_raw_params(key, *, vocab_size, dis_size, encoder_dim, embedd_dim, hidden_size):
    assert embedd_dim == hidden_size, "module's cat/Linear dims require hidden_size == embedd_dim"
    C, E, Hd, DS, V = encoder_dim, embedd_dim, hidden_size, dis_size, vocab_size
    H2 = 2 * E
    ks = jax.random.split(key, 13)

    def lin(kw, kb, fan_in, fan_out):
        b = 1.0 / (fan_in ** 0.5)
        return (jax.random.uniform(kw, (fan_in, fan_out), jnp.float32, -b, b),
                jax.random.uniform(kb, (1, fan_out), jnp.float32, -b, b))

    raw = {}
    # IMGdedimension / ROOTupdimension: weight ~ U(-0.1, 0.1), bias = 0 (init_weights())
    raw["w_img"] = jax.random.uniform(ks[0], (C, C), jnp.float32, -0.1, 0.1)
    raw["b_img"] = jnp.zeros((1, C), jnp.float32)
    raw["w_root"] = jax.random.uniform(ks[1], (E, E), jnp.float32, -0.1, 0.1)
    raw["b_root"] = jnp.zeros((1, E), jnp.float32)
    # distance_2_1: Linear(C+E, Hd) -> ReLU -> Linear(Hd, DS) -> Softmax
    raw["w_d1"], raw["b_d1"] = lin(ks[2], ks[3], E + C, Hd)
    raw["w_d2"], raw["b_d2"] = lin(ks[4], ks[5], Hd, DS)
    # relatedWordsClassifier: Linear(C+2E, 2E) -> BN2d(1) -> ReLU -> Dropout -> Linear(2E, V)
    raw["w_r1"], raw["b_r1"] = lin(ks[6], ks[7], C + 2 * E, H2)
    w_r2, b_r2 = lin(ks[8], ks[9], H2, V)
    raw["w_r2"] = w_r2.astype(jnp.bfloat16)      # big weight kept in bf16 (perf feedback)
    raw["b_r2"] = b_r2
    # BatchNorm2d(1) eval-mode affine/stats (fresh-module defaults)
    raw["bn_gamma"] = jnp.float32(1.0)
    raw["bn_beta"] = jnp.float32(0.0)
    raw["bn_mean"] = jnp.float32(0.0)
    raw["bn_var"] = jnp.float32(1.0)
    raw["bn_eps"] = jnp.float32(1e-5)
    # embedding tables (nn.Embedding default N(0, 1))
    raw["words_emb"] = jax.random.normal(ks[10], (V, E), jnp.float32)
    raw["dis_emb"] = jax.random.normal(ks[11], (DS, E), jnp.float32)
    raw["adj_emb"] = jax.random.normal(ks[12], (V, V), jnp.float32)
    return raw


def prepare_kernel_params(raw, embedd_dim, encoder_dim):
    E, C = embedd_dim, encoder_dim
    # Fold eval-mode BatchNorm2d(1) into the preceding Linear.
    scale = raw["bn_gamma"] / jnp.sqrt(raw["bn_var"] + raw["bn_eps"])
    w_r1 = raw["w_r1"] * scale
    b_r1 = (raw["b_r1"] - raw["bn_mean"]) * scale + raw["bn_beta"]
    # Adjacency gate: only the (adj < 1e-4) comparison is consumed -> precompute a compact
    # 0/1 mask once (f32 here since the table is VMEM-resident and consumed by one-hot MXU
    # matmuls; for realistic V use int8/bit-packed HBM storage + DMA row gathers).
    adj_mask = (raw["adj_emb"] < 1e-4).astype(jnp.float32)
    return dict(
        w_img=raw["w_img"], b_img=raw["b_img"],
        w_root=raw["w_root"], b_root=raw["b_root"],
        w_d1a=raw["w_d1"][:E], w_d1b=raw["w_d1"][E:], b_d1=raw["b_d1"],
        w_d2=raw["w_d2"], b_d2=raw["b_d2"], dis_emb=raw["dis_emb"],
        w_r1a=w_r1[:E], w_r1b=w_r1[E:E + C], w_r1c=w_r1[E + C:], b_r1=b_r1,
        w_r2=raw["w_r2"], b_r2=raw["b_r2"],
        words_emb=raw["words_emb"], adj_mask=adj_mask,
    )


# ----------------------------------------------------------------------------------------
# Pure-JAX reference (mirrors the PyTorch eval-mode forward, softmaxes included)
# ----------------------------------------------------------------------------------------
def reference_forward(root_node_idx, mlp_out, raw, iter_times):
    hi = jax.lax.Precision.HIGHEST
    f32 = jnp.float32
    dotf = lambda a, b: jnp.dot(a, b, precision=hi, preferred_element_type=f32)

    img_de = dotf(mlp_out, raw["w_img"]) + raw["b_img"]
    bn_scale = raw["bn_gamma"] / jnp.sqrt(raw["bn_var"] + raw["bn_eps"])
    cur = root_node_idx.astype(jnp.int32)
    prev_wp = raw["adj_emb"][cur]
    idxs, dists = [], []
    for _ in range(iter_times - 1):
        root_emb = raw["words_emb"][cur]
        root_up = dotf(root_emb, raw["w_root"]) + raw["b_root"]
        root_input = jnp.concatenate([root_up, img_de], axis=1)
        dh = jax.nn.relu(dotf(root_input, raw["w_d1"]) + raw["b_d1"])
        dprob = jax.nn.softmax(dotf(dh, raw["w_d2"]) + raw["b_d2"], axis=1)
        didx = jnp.argmax(dprob, axis=1)
        dist_e = raw["dis_emb"][didx]
        rel_in = jnp.concatenate([root_input, dist_e], axis=1)
        h = dotf(rel_in, raw["w_r1"]) + raw["b_r1"]
        h = (h - raw["bn_mean"]) * bn_scale + raw["bn_beta"]   # BatchNorm2d(1), eval mode
        h = jax.nn.relu(h)                                     # Dropout: identity (eval)
        h = h.astype(raw["w_r2"].dtype)                        # mirrors bf16 weight path
        logits = jnp.dot(h, raw["w_r2"], preferred_element_type=f32) + raw["b_r2"]
        p = logits * jnp.where(prev_wp < 1e-4, 1e-5, 1.0)
        p = jax.nn.softmax(p, axis=1)
        widx = jnp.argmax(p, axis=1)
        idxs.append(widx.astype(jnp.int32))
        dists.append(dist_e)
        prev_wp = raw["adj_emb"][widx]
        cur = widx
    return jnp.stack(idxs, axis=1), jnp.stack(dists, axis=1)


if __name__ == "__main__":
    B = 8
    ENCODER_DIM = 64          # encoder_dim
    EMBEDD_DIM = 64           # embedd_dim (== hidden_size, required by the module's dims)
    HIDDEN_SIZE = 64
    DIS_SIZE = 16
    VOCAB_SIZE = 256
    ITER_TIMES = 5

    key = jax.random.PRNGKey(0)
    k_param, k_idx, k_mlp = jax.random.split(key, 3)
    raw = init_raw_params(k_param, vocab_size=VOCAB_SIZE, dis_size=DIS_SIZE,
                          encoder_dim=ENCODER_DIM, embedd_dim=EMBEDD_DIM,
                          hidden_size=HIDDEN_SIZE)
    root_node_idx = jax.random.randint(k_idx, (B,), 0, VOCAB_SIZE, dtype=jnp.int32)
    mlp_out = jax.random.normal(k_mlp, (B, ENCODER_DIM), jnp.float32)

    kparams = prepare_kernel_params(raw, EMBEDD_DIM, ENCODER_DIM)
    fwd = jax.jit(make_graph_encoding_forward(ITER_TIMES))
    idx_out, dist_out = jax.block_until_ready(fwd(root_node_idx, mlp_out, kparams))

    # reference check (exact index parity; dist tolerance covers the in-kernel one-hot gathers)
    ref_idx, ref_dist = reference_forward(root_node_idx, mlp_out, raw, ITER_TIMES)
    assert idx_out.shape == (B, ITER_TIMES - 1)
    assert dist_out.shape == (B, ITER_TIMES - 1, EMBEDD_DIM)
    assert jnp.array_equal(idx_out, ref_idx), (idx_out, ref_idx)
    assert jnp.allclose(dist_out, ref_dist, atol=1e-4, rtol=1e-5)

    # TODO(synk): training-mode BatchNorm2d / Dropout are not implemented (inference semantics).
    print("KERNEL_OK")
</pallas_src>

<mosaic_0001>
module attributes {stable_mosaic.version = 11 : i64} {
  func.func @_graph_decode_kernel(%arg0: i32, %arg1: memref<8x64xf32, #tpu.memory_space<vmem>>, %arg2: memref<8x256xf32, #tpu.memory_space<vmem>>, %arg3: memref<64x64xf32, #tpu.memory_space<vmem>>, %arg4: memref<1x64xf32, #tpu.memory_space<vmem>>, %arg5: memref<64x64xf32, #tpu.memory_space<vmem>>, %arg6: memref<1x64xf32, #tpu.memory_space<vmem>>, %arg7: memref<64x64xf32, #tpu.memory_space<vmem>>, %arg8: memref<64x64xf32, #tpu.memory_space<vmem>>, %arg9: memref<1x64xf32, #tpu.memory_space<vmem>>, %arg10: memref<64x16xf32, #tpu.memory_space<vmem>>, %arg11: memref<1x16xf32, #tpu.memory_space<vmem>>, %arg12: memref<16x64xf32, #tpu.memory_space<vmem>>, %arg13: memref<64x128xf32, #tpu.memory_space<vmem>>, %arg14: memref<64x128xf32, #tpu.memory_space<vmem>>, %arg15: memref<64x128xf32, #tpu.memory_space<vmem>>, %arg16: memref<1x128xf32, #tpu.memory_space<vmem>>, %arg17: memref<128x256xbf16, #tpu.memory_space<vmem>>, %arg18: memref<1x256xf32, #tpu.memory_space<vmem>>, %arg19: memref<256x64xf32, #tpu.memory_space<vmem>>, %arg20: memref<256x256xf32, #tpu.memory_space<vmem>>, %arg21: memref<1x8x1xi32, #tpu.memory_space<vmem>>, %arg22: memref<1x8x64xf32, #tpu.memory_space<vmem>>, %arg23: memref<8x64xf32, #tpu.memory_space<vmem>>, %arg24: memref<8x256xf32, #tpu.memory_space<vmem>>) attributes {dimension_semantics = [#tpu.dimension_semantics<arbitrary>], iteration_bounds = array<i64: 4>, scalar_prefetch = 0 : i64, scratch_operands = 2 : i64, tpu.core_type = #tpu.core_type<tc>, window_params = [{pipeline_mode = #tpu.pipeline_mode<synchronous>, transform_indices = @transform_0, window_bounds = array<i64: 8, 64>}, {pipeline_mode = #tpu.pipeline_mode<synchronous>, transform_indices = @transform_1, window_bounds = array<i64: 8, 256>}, {pipeline_mode = #tpu.pipeline_mode<synchronous>, transform_indices = @transform_2, window_bounds = array<i64: 64, 64>}, {pipeline_mode = #tpu.pipeline_mode<synchronous>, transform_indices = @transform_3, window_bounds = array<i64: 1, 64>}, {pipeline_mode = #tpu.pipeline_mode<synchronous>, transform_indices = @transform_4, window_bounds = array<i64: 64, 64>}, {pipeline_mode = #tpu.pipeline_mode<synchronous>, transform_indices = @transform_5, window_bounds = array<i64: 1, 64>}, {pipeline_mode = #tpu.pipeline_mode<synchronous>, transform_indices = @transform_6, window_bounds = array<i64: 64, 64>}, {pipeline_mode = #tpu.pipeline_mode<synchronous>, transform_indices = @transform_7, window_bounds = array<i64: 64, 64>}, {pipeline_mode = #tpu.pipeline_mode<synchronous>, transform_indices = @transform_8, window_bounds = array<i64: 1, 64>}, {pipeline_mode = #tpu.pipeline_mode<synchronous>, transform_indices = @transform_9, window_bounds = array<i64: 64, 16>}, {pipeline_mode = #tpu.pipeline_mode<synchronous>, transform_indices = @transform_10, window_bounds = array<i64: 1, 16>}, {pipeline_mode = #tpu.pipeline_mode<synchronous>, transform_indices = @transform_11, window_bounds = array<i64: 16, 64>}, {pipeline_mode = #tpu.pipeline_mode<synchronous>, transform_indices = @transform_12, window_bounds = array<i64: 64, 128>}, {pipeline_mode = #tpu.pipeline_mode<synchronous>, transform_indices = @transform_13, window_bounds = array<i64: 64, 128>}, {pipeline_mode = #tpu.pipeline_mode<synchronous>, transform_indices = @transform_14, window_bounds = array<i64: 64, 128>}, {pipeline_mode = #tpu.pipeline_mode<synchronous>, transform_indices = @transform_15, window_bounds = array<i64: 1, 128>}, {pipeline_mode = #tpu.pipeline_mode<synchronous>, transform_indices = @transform_16, window_bounds = array<i64: 128, 256>}, {pipeline_mode = #tpu.pipeline_mode<synchronous>, transform_indices = @transform_17, window_bounds = array<i64: 1, 256>}, {pipeline_mode = #tpu.pipeline_mode<synchronous>, transform_indices = @transform_18, window_bounds = array<i64: 256, 64>}, {pipeline_mode = #tpu.pipeline_mode<synchronous>, transform_indices = @transform_19, window_bounds = array<i64: 256, 256>}, {transform_indices = @transform_20, window_bounds = array<i64: 1, 8, 1>}, {transform_indices = @transform_21, window_bounds = array<i64: 1, 8, 64>}]} {
    %c0_i32 = arith.constant 0 : i32
    %0 = arith.cmpi eq, %arg0, %c0_i32 : i32
    %1 = arith.extui %0 : i1 to i32
    %c0_i32_0 = arith.constant 0 : i32
    %2 = arith.cmpi ne, %1, %c0_i32_0 : i32
    scf.if %2 {
      %c0_63 = arith.constant 0 : index
      %c0_64 = arith.constant 0 : index
      %90 = vector.load %arg1[%c0_63, %c0_64] : memref<8x64xf32, #tpu.memory_space<vmem>>, vector<8x64xf32>
      %c0_65 = arith.constant 0 : index
      %c0_66 = arith.constant 0 : index
      %91 = vector.load %arg3[%c0_65, %c0_66] : memref<64x64xf32, #tpu.memory_space<vmem>>, vector<64x64xf32>
      %cst_67 = arith.constant dense<0.000000e+00> : vector<8x64xf32>
      %92 = tpu.matmul %90, %91, %cst_67 {dimension_numbers = #tpu.dot_dimension_numbers<[1], [0], [0], [1], [0, 0, 1, 1], [], []>} : vector<8x64xf32>, vector<64x64xf32>, vector<8x64xf32> -> vector<8x64xf32>
      %c0_68 = arith.constant 0 : index
      %c0_69 = arith.constant 0 : index
      %93 = vector.load %arg4[%c0_68, %c0_69] : memref<1x64xf32, #tpu.memory_space<vmem>>, vector<1x64xf32>
      %94 = vector.broadcast %93 : vector<1x64xf32> to vector<8x64xf32>
      %95 = arith.addf %92, %94 : vector<8x64xf32>
      %c0_70 = arith.constant 0 : index
      %c0_71 = arith.constant 0 : index
      %96 = vector.load %arg23[%c0_70, %c0_71] : memref<8x64xf32, #tpu.memory_space<vmem>>, vector<8x64xf32>
      tpu.vector_store %arg23[%c0_70, %c0_71], %95 {strides = array<i32>} : memref<8x64xf32, #tpu.memory_space<vmem>>, vector<8x64xf32>,
      %c0_72 = arith.constant 0 : index
      %c0_73 = arith.constant 0 : index
      %97 = vector.load %arg2[%c0_72, %c0_73] : memref<8x256xf32, #tpu.memory_space<vmem>>, vector<8x256xf32>
      %c0_74 = arith.constant 0 : index
      %c0_75 = arith.constant 0 : index
      %98 = vector.load %arg24[%c0_74, %c0_75] : memref<8x256xf32, #tpu.memory_space<vmem>>, vector<8x256xf32>
      tpu.vector_store %arg24[%c0_74, %c0_75], %97 {strides = array<i32>} : memref<8x256xf32, #tpu.memory_space<vmem>>, vector<8x256xf32>,
    } else {
    }
    %c0 = arith.constant 0 : index
    %c0_1 = arith.constant 0 : index
    %3 = vector.load %arg24[%c0, %c0_1] : memref<8x256xf32, #tpu.memory_space<vmem>>, vector<8x256xf32>
    %c0_2 = arith.constant 0 : index
    %c0_3 = arith.constant 0 : index
    %4 = vector.load %arg23[%c0_2, %c0_3] : memref<8x64xf32, #tpu.memory_space<vmem>>, vector<8x64xf32>
    %c0_4 = arith.constant 0 : index
    %c0_5 = arith.constant 0 : index
    %5 = vector.load %arg19[%c0_4, %c0_5] : memref<256x64xf32, #tpu.memory_space<vmem>>, vector<256x64xf32>
    %cst = arith.constant dense<0.000000e+00> : vector<8x64xf32>
    %6 = tpu.matmul %3, %5, %cst {dimension_numbers = #tpu.dot_dimension_numbers<[1], [0], [0], [1], [0, 0, 1, 1], [], []>} : vector<8x256xf32>, vector<256x64xf32>, vector<8x64xf32> -> vector<8x64xf32>
    %c0_6 = arith.constant 0 : index
    %c0_7 = arith.constant 0 : index
    %7 = vector.load %arg20[%c0_6, %c0_7] : memref<256x256xf32, #tpu.memory_space<vmem>>, vector<256x256xf32>
    %cst_8 = arith.constant dense<0.000000e+00> : vector<8x256xf32>
    %8 = tpu.matmul %3, %7, %cst_8 {dimension_numbers = #tpu.dot_dimension_numbers<[1], [0], [0], [1], [0, 0, 1, 1], [], []>} : vector<8x256xf32>, vector<256x256xf32>, vector<8x256xf32> -> vector<8x256xf32>
    %cst_9 = arith.constant 5.000000e-01 : f32
    %9 = vector.broadcast %cst_9 : f32 to vector<8x256xf32>
    %10 = arith.cmpf oge, %8, %9 : vector<8x256xf32>
    %cst_10 = arith.constant 9.99999974E-6 : f32
    %cst_11 = arith.constant 1.000000e+00 : f32
    %11 = vector.broadcast %cst_10 : f32 to vector<8x256xf32>
    %12 = vector.broadcast %cst_11 : f32 to vector<8x256xf32>
    %13 = arith.select %10, %11, %12 : vector<8x256xi1>, vector<8x256xf32>
    %c0_12 = arith.constant 0 : index
    %c0_13 = arith.constant 0 : index
    %14 = vector.load %arg5[%c0_12, %c0_13] : memref<64x64xf32, #tpu.memory_space<vmem>>, vector<64x64xf32>
    %cst_14 = arith.constant dense<0.000000e+00> : vector<8x64xf32>
    %15 = tpu.matmul %6, %14, %cst_14 {dimension_numbers = #tpu.dot_dimension_numbers<[1], [0], [0], [1], [0, 0, 1, 1], [], []>} : vector<8x64xf32>, vector<64x64xf32>, vector<8x64xf32> -> vector<8x64xf32>
    %c0_15 = arith.constant 0 : index
    %c0_16 = arith.constant 0 : index
    %16 = vector.load %arg6[%c0_15, %c0_16] : memref<1x64xf32, #tpu.memory_space<vmem>>, vector<1x64xf32>
    %17 = vector.broadcast %16 : vector<1x64xf32> to vector<8x64xf32>
    %18 = arith.addf %15, %17 : vector<8x64xf32>
    %c0_17 = arith.constant 0 : index
    %c0_18 = arith.constant 0 : index
    %19 = vector.load %arg7[%c0_17, %c0_18] : memref<64x64xf32, #tpu.memory_space<vmem>>, vector<64x64xf32>
    %cst_19 = arith.constant dense<0.000000e+00> : vector<8x64xf32>
    %20 = tpu.matmul %18, %19, %cst_19 {dimension_numbers = #tpu.dot_dimension_numbers<[1], [0], [0], [1], [0, 0, 1, 1], [], []>} : vector<8x64xf32>, vector<64x64xf32>, vector<8x64xf32> -> vector<8x64xf32>
    %c0_20 = arith.constant 0 : index
    %c0_21 = arith.constant 0 : index
    %21 = vector.load %arg8[%c0_20, %c0_21] : memref<64x64xf32, #tpu.memory_space<vmem>>, vector<64x64xf32>
    %cst_22 = arith.constant dense<0.000000e+00> : vector<8x64xf32>
    %22 = tpu.matmul %4, %21, %cst_22 {dimension_numbers = #tpu.dot_dimension_numbers<[1], [0], [0], [1], [0, 0, 1, 1], [], []>} : vector<8x64xf32>, vector<64x64xf32>, vector<8x64xf32> -> vector<8x64xf32>
    %23 = arith.addf %20, %22 : vector<8x64xf32>
    %c0_23 = arith.constant 0 : index
    %c0_24 = arith.constant 0 : index
    %24 = vector.load %arg9[%c0_23, %c0_24] : memref<1x64xf32, #tpu.memory_space<vmem>>, vector<1x64xf32>
    %25 = vector.broadcast %24 : vector<1x64xf32> to vector<8x64xf32>
    %26 = arith.addf %23, %25 : vector<8x64xf32>
    %cst_25 = arith.constant 0.000000e+00 : f32
    %27 = vector.broadcast %cst_25 : f32 to vector<8x64xf32>
    %28 = arith.maximumf %26, %27 : vector<8x64xf32>
    %c0_26 = arith.constant 0 : index
    %c0_27 = arith.constant 0 : index
    %29 = vector.load %arg10[%c0_26, %c0_27] : memref<64x16xf32, #tpu.memory_space<vmem>>, vector<64x16xf32>
    %cst_28 = arith.constant dense<0.000000e+00> : vector<8x16xf32>
    %30 = tpu.matmul %28, %29, %cst_28 {dimension_numbers = #tpu.dot_dimension_numbers<[1], [0], [0], [1], [0, 0, 1, 1], [], []>} : vector<8x64xf32>, vector<64x16xf32>, vector<8x16xf32> -> vector<8x16xf32>
    %c0_29 = arith.constant 0 : index
    %c0_30 = arith.constant 0 : index
    %31 = vector.load %arg11[%c0_29, %c0_30] : memref<1x16xf32, #tpu.memory_space<vmem>>, vector<1x16xf32>
    %32 = vector.broadcast %31 : vector<1x16xf32> to vector<8x16xf32>
    %33 = arith.addf %30, %32 : vector<8x16xf32>
    %cst_31 = arith.constant dense<0xFF800000> : vector<8xf32>
    %34 = vector.multi_reduction <maximumf>, %33, %cst_31 [1] : vector<8x16xf32> to vector<8xf32>
    %35 = vector.shape_cast %34 : vector<8xf32> to vector<8x1xf32>
    %36 = tpu.iota {dimensions = array<i32: 1>} : vector<8x16xi32>
    %37 = vector.broadcast %35 : vector<8x1xf32> to vector<8x16xf32>
    %38 = arith.cmpf oeq, %33, %37 : vector<8x16xf32>
    %c16_i32 = arith.constant 16 : i32
    %39 = vector.broadcast %c16_i32 : i32 to vector<8x16xi32>
    %40 = arith.select %38, %36, %39 : vector<8x16xi1>, vector<8x16xi32>
    %cst_32 = arith.constant dense<2147483647> : vector<8xi32>
    %41 = vector.multi_reduction <minsi>, %40, %cst_32 [1] : vector<8x16xi32> to vector<8xi32>
    %42 = vector.shape_cast %41 : vector<8xi32> to vector<8x1xi32>
    %43 = tpu.iota {dimensions = array<i32: 1>} : vector<8x16xi32>
    %44 = vector.broadcast %42 : vector<8x1xi32> to vector<8x16xi32>
    %45 = arith.cmpi eq, %43, %44 : vector<8x16xi32>
    %46 = arith.extui %45 : vector<8x16xi1> to vector<8x16xi32>
    %47 = arith.sitofp %46 : vector<8x16xi32> to vector<8x16xf32>
    %c0_33 = arith.constant 0 : index
    %c0_34 = arith.constant 0 : index
    %48 = vector.load %arg12[%c0_33, %c0_34] : memref<16x64xf32, #tpu.memory_space<vmem>>, vector<16x64xf32>
    %cst_35 = arith.constant dense<0.000000e+00> : vector<8x64xf32>
    %49 = tpu.matmul %47, %48, %cst_35 {dimension_numbers = #tpu.dot_dimension_numbers<[1], [0], [0], [1], [0, 0, 1, 1], [], []>} : vector<8x16xf32>, vector<16x64xf32>, vector<8x64xf32> -> vector<8x64xf32>
    %c0_36 = arith.constant 0 : index
    %c0_37 = arith.constant 0 : index
    %c0_38 = arith.constant 0 : index
    %50 = vector.load %arg22[%c0_36, %c0_37, %c0_38] : memref<1x8x64xf32, #tpu.memory_space<vmem>>, vector<1x8x64xf32>
    %51 = vector.shape_cast %50 : vector<1x8x64xf32> to vector<8x64xf32>
    %52 = vector.shape_cast %49 : vector<8x64xf32> to vector<1x8x64xf32>
    tpu.vector_store %arg22[%c0_36, %c0_37, %c0_38], %52 {strides = array<i32>} : memref<1x8x64xf32, #tpu.memory_space<vmem>>, vector<1x8x64xf32>,
    %c0_39 = arith.constant 0 : index
    %c0_40 = arith.constant 0 : index
    %53 = vector.load %arg13[%c0_39, %c0_40] : memref<64x128xf32, #tpu.memory_space<vmem>>, vector<64x128xf32>
    %cst_41 = arith.constant dense<0.000000e+00> : vector<8x128xf32>
    %54 = tpu.matmul %18, %53, %cst_41 {dimension_numbers = #tpu.dot_dimension_numbers<[1], [0], [0], [1], [0, 0, 1, 1], [], []>} : vector<8x64xf32>, vector<64x128xf32>, vector<8x128xf32> -> vector<8x128xf32>
    %c0_42 = arith.constant 0 : index
    %c0_43 = arith.constant 0 : index
    %55 = vector.load %arg14[%c0_42, %c0_43] : memref<64x128xf32, #tpu.memory_space<vmem>>, vector<64x128xf32>
    %cst_44 = arith.constant dense<0.000000e+00> : vector<8x128xf32>
    %56 = tpu.matmul %4, %55, %cst_44 {dimension_numbers = #tpu.dot_dimension_numbers<[1], [0], [0], [1], [0, 0, 1, 1], [], []>} : vector<8x64xf32>, vector<64x128xf32>, vector<8x128xf32> -> vector<8x128xf32>
    %57 = arith.addf %54, %56 : vector<8x128xf32>
    %c0_45 = arith.constant 0 : index
    %c0_46 = arith.constant 0 : index
    %58 = vector.load %arg15[%c0_45, %c0_46] : memref<64x128xf32, #tpu.memory_space<vmem>>, vector<64x128xf32>
    %cst_47 = arith.constant dense<0.000000e+00> : vector<8x128xf32>
    %59 = tpu.matmul %49, %58, %cst_47 {dimension_numbers = #tpu.dot_dimension_numbers<[1], [0], [0], [1], [0, 0, 1, 1], [], []>} : vector<8x64xf32>, vector<64x128xf32>, vector<8x128xf32> -> vector<8x128xf32>
    %60 = arith.addf %57, %59 : vector<8x128xf32>
    %c0_48 = arith.constant 0 : index
    %c0_49 = arith.constant 0 : index
    %61 = vector.load %arg16[%c0_48, %c0_49] : memref<1x128xf32, #tpu.memory_space<vmem>>, vector<1x128xf32>
    %62 = vector.broadcast %61 : vector<1x128xf32> to vector<8x128xf32>
    %63 = arith.addf %60, %62 : vector<8x128xf32>
    %cst_50 = arith.constant 0.000000e+00 : f32
    %64 = vector.broadcast %cst_50 : f32 to vector<8x128xf32>
    %65 = arith.maximumf %63, %64 : vector<8x128xf32>
    %66 = arith.truncf %65 : vector<8x128xf32> to vector<8x128xbf16>
    %c0_51 = arith.constant 0 : index
    %c0_52 = arith.constant 0 : index
    %67 = vector.load %arg17[%c0_51, %c0_52] : memref<128x256xbf16, #tpu.memory_space<vmem>>, vector<128x256xbf16>
    %cst_53 = arith.constant dense<0.000000e+00> : vector<8x256xf32>
    %68 = tpu.matmul %66, %67, %cst_53 {dimension_numbers = #tpu.dot_dimension_numbers<[1], [0], [0], [1], [0, 0, 1, 1], [], []>} : vector<8x128xbf16>, vector<128x256xbf16>, vector<8x256xf32> -> vector<8x256xf32>
    %c0_54 = arith.constant 0 : index
    %c0_55 = arith.constant 0 : index
    %69 = vector.load %arg18[%c0_54, %c0_55] : memref<1x256xf32, #tpu.memory_space<vmem>>, vector<1x256xf32>
    %70 = vector.broadcast %69 : vector<1x256xf32> to vector<8x256xf32>
    %71 = arith.addf %68, %70 : vector<8x256xf32>
    %72 = arith.mulf %71, %13 : vector<8x256xf32>
    %cst_56 = arith.constant dense<0xFF800000> : vector<8xf32>
    %73 = vector.multi_reduction <maximumf>, %72, %cst_56 [1] : vector<8x256xf32> to vector<8xf32>
    %74 = vector.shape_cast %73 : vector<8xf32> to vector<8x1xf32>
    %75 = tpu.iota {dimensions = array<i32: 1>} : vector<8x256xi32>
    %76 = vector.broadcast %74 : vector<8x1xf32> to vector<8x256xf32>
    %77 = arith.cmpf oeq, %72, %76 : vector<8x256xf32>
    %c256_i32 = arith.constant 256 : i32
    %78 = vector.broadcast %c256_i32 : i32 to vector<8x256xi32>
    %79 = arith.select %77, %75, %78 : vector<8x256xi1>, vector<8x256xi32>
    %cst_57 = arith.constant dense<2147483647> : vector<8xi32>
    %80 = vector.multi_reduction <minsi>, %79, %cst_57 [1] : vector<8x256xi32> to vector<8xi32>
    %81 = vector.shape_cast %80 : vector<8xi32> to vector<8x1xi32>
    %c0_58 = arith.constant 0 : index
    %c0_59 = arith.constant 0 : index
    %c0_60 = arith.constant 0 : index
    %82 = vector.load %arg21[%c0_58, %c0_59, %c0_60] : memref<1x8x1xi32, #tpu.memory_space<vmem>>, vector<1x8x1xi32>
    %83 = vector.shape_cast %82 : vector<1x8x1xi32> to vector<8x1xi32>
    %84 = vector.shape_cast %81 : vector<8x1xi32> to vector<1x8x1xi32>
    tpu.vector_store %arg21[%c0_58, %c0_59, %c0_60], %84 {strides = array<i32>} : memref<1x8x1xi32, #tpu.memory_space<vmem>>, vector<1x8x1xi32>,
    %85 = vector.broadcast %81 : vector<8x1xi32> to vector<8x256xi32>
    %86 = arith.cmpi eq, %75, %85 : vector<8x256xi32>
    %87 = arith.extui %86 : vector<8x256xi1> to vector<8x256xi32>
    %88 = arith.sitofp %87 : vector<8x256xi32> to vector<8x256xf32>
    %c0_61 = arith.constant 0 : index
    %c0_62 = arith.constant 0 : index
    %89 = vector.load %arg24[%c0_61, %c0_62] : memref<8x256xf32, #tpu.memory_space<vmem>>, vector<8x256xf32>
    tpu.vector_store %arg24[%c0_61, %c0_62], %88 {strides = array<i32>} : memref<8x256xf32, #tpu.memory_space<vmem>>, vector<8x256xf32>,
    return
  }
  func.func @transform_0(%arg0: i32) -> (i32, i32) {
    %c0_i32 = arith.constant 0 : i32
    %c0_i32_0 = arith.constant 0 : i32
    %c0_i32_1 = arith.constant 0 : i32
    return %c0_i32, %c0_i32_0 : i32, i32
  }
  func.func @transform_1(%arg0: i32) -> (i32, i32) {
    %c0_i32 = arith.constant 0 : i32
    %c0_i32_0 = arith.constant 0 : i32
    %c0_i32_1 = arith.constant 0 : i32
    return %c0_i32, %c0_i32_0 : i32, i32
  }
  func.func @transform_2(%arg0: i32) -> (i32, i32) {
    %c0_i32 = arith.constant 0 : i32
    %c0_i32_0 = arith.constant 0 : i32
    %c0_i32_1 = arith.constant 0 : i32
    return %c0_i32, %c0_i32_0 : i32, i32
  }
  func.func @transform_3(%arg0: i32) -> (i32, i32) {
    %c0_i32 = arith.constant 0 : i32
    %c0_i32_0 = arith.constant 0 : i32
    %c0_i32_1 = arith.constant 0 : i32
    return %c0_i32, %c0_i32_0 : i32, i32
  }
  func.func @transform_4(%arg0: i32) -> (i32, i32) {
    %c0_i32 = arith.constant 0 : i32
    %c0_i32_0 = arith.constant 0 : i32
    %c0_i32_1 = arith.constant 0 : i32
    return %c0_i32, %c0_i32_0 : i32, i32
  }
  func.func @transform_5(%arg0: i32) -> (i32, i32) {
    %c0_i32 = arith.constant 0 : i32
    %c0_i32_0 = arith.constant 0 : i32
    %c0_i32_1 = arith.constant 0 : i32
    return %c0_i32, %c0_i32_0 : i32, i32
  }
  func.func @transform_6(%arg0: i32) -> (i32, i32) {
    %c0_i32 = arith.constant 0 : i32
    %c0_i32_0 = arith.constant 0 : i32
    %c0_i32_1 = arith.constant 0 : i32
    return %c0_i32, %c0_i32_0 : i32, i32
  }
  func.func @transform_7(%arg0: i32) -> (i32, i32) {
    %c0_i32 = arith.constant 0 : i32
    %c0_i32_0 = arith.constant 0 : i32
    %c0_i32_1 = arith.constant 0 : i32
    return %c0_i32, %c0_i32_0 : i32, i32
  }
  func.func @transform_8(%arg0: i32) -> (i32, i32) {
    %c0_i32 = arith.constant 0 : i32
    %c0_i32_0 = arith.constant 0 : i32
    %c0_i32_1 = arith.constant 0 : i32
    return %c0_i32, %c0_i32_0 : i32, i32
  }
  func.func @transform_9(%arg0: i32) -> (i32, i32) {
    %c0_i32 = arith.constant 0 : i32
    %c0_i32_0 = arith.constant 0 : i32
    %c0_i32_1 = arith.constant 0 : i32
    return %c0_i32, %c0_i32_0 : i32, i32
  }
  func.func @transform_10(%arg0: i32) -> (i32, i32) {
    %c0_i32 = arith.constant 0 : i32
    %c0_i32_0 = arith.constant 0 : i32
    %c0_i32_1 = arith.constant 0 : i32
    return %c0_i32, %c0_i32_0 : i32, i32
  }
  func.func @transform_11(%arg0: i32) -> (i32, i32) {
    %c0_i32 = arith.constant 0 : i32
    %c0_i32_0 = arith.constant 0 : i32
    %c0_i32_1 = arith.constant 0 : i32
    return %c0_i32, %c0_i32_0 : i32, i32
  }
  func.func @transform_12(%arg0: i32) -> (i32, i32) {
    %c0_i32 = arith.constant 0 : i32
    %c0_i32_0 = arith.constant 0 : i32
    %c0_i32_1 = arith.constant 0 : i32
    return %c0_i32, %c0_i32_0 : i32, i32
  }
  func.func @transform_13(%arg0: i32) -> (i32, i32) {
    %c0_i32 = arith.constant 0 : i32
    %c0_i32_0 = arith.constant 0 : i32
    %c0_i32_1 = arith.constant 0 : i32
    return %c0_i32, %c0_i32_0 : i32, i32
  }
  func.func @transform_14(%arg0: i32) -> (i32, i32) {
    %c0_i32 = arith.constant 0 : i32
    %c0_i32_0 = arith.constant 0 : i32
    %c0_i32_1 = arith.constant 0 : i32
    return %c0_i32, %c0_i32_0 : i32, i32
  }
  func.func @transform_15(%arg0: i32) -> (i32, i32) {
    %c0_i32 = arith.constant 0 : i32
    %c0_i32_0 = arith.constant 0 : i32
    %c0_i32_1 = arith.constant 0 : i32
    return %c0_i32, %c0_i32_0 : i32, i32
  }
  func.func @transform_16(%arg0: i32) -> (i32, i32) {
    %c0_i32 = arith.constant 0 : i32
    %c0_i32_0 = arith.constant 0 : i32
    %c0_i32_1 = arith.constant 0 : i32
    return %c0_i32, %c0_i32_0 : i32, i32
  }
  func.func @transform_17(%arg0: i32) -> (i32, i32) {
    %c0_i32 = arith.constant 0 : i32
    %c0_i32_0 = arith.constant 0 : i32
    %c0_i32_1 = arith.constant 0 : i32
    return %c0_i32, %c0_i32_0 : i32, i32
  }
  func.func @transform_18(%arg0: i32) -> (i32, i32) {
    %c0_i32 = arith.constant 0 : i32
    %c0_i32_0 = arith.constant 0 : i32
    %c0_i32_1 = arith.constant 0 : i32
    return %c0_i32, %c0_i32_0 : i32, i32
  }
  func.func @transform_19(%arg0: i32) -> (i32, i32) {
    %c0_i32 = arith.constant 0 : i32
    %c0_i32_0 = arith.constant 0 : i32
    %c0_i32_1 = arith.constant 0 : i32
    return %c0_i32, %c0_i32_0 : i32, i32
  }
  func.func @transform_20(%arg0: i32) -> (i32, i32, i32) {
    %c0_i32 = arith.constant 0 : i32
    %c0_i32_0 = arith.constant 0 : i32
    %c0_i32_1 = arith.constant 0 : i32
    return %arg0, %c0_i32, %c0_i32_0 : i32, i32, i32
  }
  func.func @transform_21(%arg0: i32) -> (i32, i32, i32) {
    %c0_i32 = arith.constant 0 : i32
    %c0_i32_0 = arith.constant 0 : i32
    %c0_i32_1 = arith.constant 0 : i32
    return %arg0, %c0_i32, %c0_i32_0 : i32, i32, i32
  }
}

</mosaic_0001>

<llo_original>
// kernel: forward.1
$region0: #{forward.1}
  #allocation0 [shape = 'u32[]', space=smem, size = 0x4, offset = 0x4, fixed_abs, tag = 'smem constant byte address 0x4 - core index']
  #allocation1 [shape = 'u32[144,128]{1,0:T(1,128)}', space=vmem, size = 0x12000, scoped, tag = 'internal scratch']
  #allocation2 [shape = 'f32[8,64]{1,0:T(8,128)}', space=vmem, size = 0x1000, scoped, tag = 'scratch operand']
  #allocation3 [shape = 'f32[8,256]{1,0:T(8,128)}', space=vmem, size = 0x2000, scoped, tag = 'scratch operand']
  %s0 = inlined_call_operand.hbm [shape: f32[8,64], index: 0, kind: input, shape index: {}]
  %s1 = inlined_call_operand.vmem [shape: f32[8,256], index: 1, kind: input, shape index: {}]
  %s2 = inlined_call_operand.vmem [shape: f32[64,64], index: 2, kind: input, shape index: {}]
  %s3 = inlined_call_operand.vmem [shape: f32[1,64], index: 3, kind: input, shape index: {}]
  %s4 = inlined_call_operand.vmem [shape: f32[64,64], index: 4, kind: input, shape index: {}]
  %s5 = inlined_call_operand.hbm [shape: f32[1,64], index: 5, kind: input, shape index: {}]
  %s6 = inlined_call_operand.vmem [shape: f32[64,64], index: 6, kind: input, shape index: {}]
  %s7 = inlined_call_operand.vmem [shape: f32[64,64], index: 7, kind: input, shape index: {}]
  %s8 = inlined_call_operand.hbm [shape: f32[1,64], index: 8, kind: input, shape index: {}]
  %s9 = inlined_call_operand.vmem [shape: f32[64,16], index: 9, kind: input, shape index: {}]
  %s10 = inlined_call_operand.hbm [shape: f32[1,16], index: 10, kind: input, shape index: {}]
  %s11 = inlined_call_operand.hbm [shape: f32[16,64], index: 11, kind: input, shape index: {}]
  %s12 = inlined_call_operand.hbm [shape: f32[64,128], index: 12, kind: input, shape index: {}]
  %s13 = inlined_call_operand.hbm [shape: f32[64,128], index: 13, kind: input, shape index: {}]
  %s14 = inlined_call_operand.hbm [shape: f32[64,128], index: 14, kind: input, shape index: {}]
  %s15 = inlined_call_operand.hbm [shape: f32[1,128], index: 15, kind: input, shape index: {}]
  %s16 = inlined_call_operand.vmem [shape: bf16[128,256], index: 16, kind: input, shape index: {}]
  %s17 = inlined_call_operand.vmem [shape: f32[1,256], index: 17, kind: input, shape index: {}]
  %s18 = inlined_call_operand.vmem [shape: f32[256,64], index: 18, kind: input, shape index: {}]
  %s19 = inlined_call_operand.hbm [shape: f32[256,256], index: 19, kind: input, shape index: {}]
  %s20 = inlined_call_operand.vmem [shape: s32[4,8,1], index: 20, kind: output, shape index: {0}]
  %s21 = inlined_call_operand.vmem [shape: f32[4,8,64], index: 21, kind: output, shape index: {1}]
  %22 = xla_tuple %s20, %s21
  %s23 = sld [smem:[#allocation0]]
  $region165: #{forward.1} parent=0
    _
  %s25 = ssub.s32 1, %s23
  %s26 = scalar_select 0, %s25, %s23
  $region1: #{forward.1} parent=0
    #allocation4 [shape = 'u8[4096]{0}', space=vmem, size = 0x1000, scoped, tag = 'input window, operand 0, single buffered']
    #allocation5 [shape = 's32[2]{0}', space=sflag, size = 0x8, scoped, tag = 'scoped memory for forward.1']
    #allocation6 [shape = 'u8[512]{0}', space=vmem, size = 0x400, scoped, tag = 'input window, operand 5, single buffered']
    #allocation7 [shape = 's32[1]{0}', space=sflag, size = 0x4, scoped, tag = 'scoped memory for forward.1']
    #allocation8 [shape = 'u8[512]{0}', space=vmem, size = 0x400, scoped, tag = 'input window, operand 8, single buffered']
    #allocation9 [shape = 'u8[512]{0}', space=vmem, size = 0x400, scoped, tag = 'input window, operand 10, single buffered']
    #allocation10 [shape = 's32[1]{0}', space=sflag, size = 0x4, scoped, tag = 'scoped memory for forward.1']
    #allocation11 [shape = 'u8[8192]{0}', space=vmem, size = 0x2000, scoped, tag = 'input window, operand 11, single buffered']
    #allocation12 [shape = 'u8[32768]{0}', space=vmem, size = 0x8000, scoped, tag = 'input window, operand 12, single buffered']
    #allocation13 [shape = 's32[1]{0}', space=sflag, size = 0x4, scoped, tag = 'scoped memory for forward.1']
    #allocation14 [shape = 'u8[32768]{0}', space=vmem, size = 0x8000, scoped, tag = 'input window, operand 13, single buffered']
    #allocation15 [shape = 'u8[32768]{0}', space=vmem, size = 0x8000, scoped, tag = 'input window, operand 14, single buffered']
    #allocation16 [shape = 's32[1]{0}', space=sflag, size = 0x4, scoped, tag = 'scoped memory for forward.1']
    #allocation17 [shape = 'u8[512]{0}', space=vmem, size = 0x400, scoped, tag = 'input window, operand 15, single buffered']
    #allocation18 [shape = 'u8[262144]{0}', space=vmem, size = 0x40000, scoped, tag = 'input window, operand 19, single buffered']
    #allocation19 [shape = 's32[1]{0}', space=sflag, size = 0x4, scoped, tag = 'scoped memory for forward.1']
    %27 = vsyncpa [#allocation5], 0
    %28 = vsyncpa [#allocation7], 0
    %29 = vsyncpa [#allocation10], 0
    %30 = vsyncpa [#allocation13], 0
    %31 = vsyncpa [#allocation16], 0
    %32 = vsyncpa [#allocation19], 0
    loop: start=0, step=1, limit=6
    $region2: #{forward.1} parent=1 // loop_pre_header
      _
    $region3: #{forward.1} parent=1 // loop_header
      %s34 = sphi 0, %s38
      %p35 = scmp.ge.s32.totalorder %s34, 6
      %s42 = sphi 0, %s42
      %s44 = sphi 0, %s42
      %s45 = sphi 0, %s44
      %s59 = sphi 0, %s45
      %s63 = sphi 0, %s63
      %s65 = sphi 0, %s63
      %s66 = sphi 0, %s65
      %s80 = sphi 0, %s66
      %s84 = sphi 0, %s84
      %s86 = sphi 0, %s84
      %s87 = sphi 0, %s86
      %s101 = sphi 0, %s87
      %s105 = sphi 0, %s105
      %s107 = sphi 0, %s105
      %s108 = sphi 0, %s107
      %s122 = sphi 0, %s108
      %s126 = sphi 0, %s126
      %s128 = sphi 0, %s126
      %s129 = sphi 0, %s128
      %s143 = sphi 0, %s129
      %s147 = sphi 0, %s147
      %s149 = sphi 0, %s147
      %s150 = sphi 0, %s149
      %s164 = sphi 0, %s150
      %s168 = sphi 0, %s168
      %s170 = sphi 0, %s168
      %s171 = sphi 0, %s170
      %s185 = sphi 0, %s171
      %s189 = sphi 0, %s189
      %s191 = sphi 0, %s189
      %s192 = sphi 0, %s191
      %s206 = sphi 0, %s192
      %s210 = sphi 0, %s210
      %s212 = sphi 0, %s210
      %s213 = sphi 0, %s212
      %s227 = sphi 0, %s213
      %s231 = sphi 0, %s231
      %s233 = sphi 0, %s231
      %s234 = sphi 0, %s233
      %s248 = sphi 0, %s234
      %s252 = sphi 0, %s252
      %s254 = sphi 0, %s252
      %s255 = sphi 0, %s254
      %s269 = sphi 0, %s255
      %s273 = sphi 0, %s273
      %s275 = sphi 0, %s273
      %s276 = sphi 0, %s275
      %s290 = sphi 0, %s276
      %s294 = sphi 0, %s294
      %s296 = sphi 0, %s294
      %s297 = sphi 0, %s296
      %s311 = sphi 0, %s297
      %s315 = sphi 0, %s315
      %s317 = sphi 0, %s315
      %s318 = sphi 0, %s317
      %s332 = sphi 0, %s318
      %s336 = sphi 0, %s336
      %s338 = sphi 0, %s336
      %s339 = sphi 0, %s338
      %s353 = sphi 0, %s339
      %s357 = sphi 0, %s357
      %s359 = sphi 0, %s357
      %s360 = sphi 0, %s359
      %s374 = sphi 0, %s360
      %s378 = sphi 0, %s378
      %s380 = sphi 0, %s378
      %s381 = sphi 0, %s380
      %s395 = sphi 0, %s381
      %s399 = sphi 0, %s399
      %s401 = sphi 0, %s399
      %s402 = sphi 0, %s401
      %s416 = sphi 0, %s402
      %s420 = sphi 0, %s420
      %s422 = sphi 0, %s420
      %s423 = sphi 0, %s422
      %s437 = sphi 0, %s423
      %s441 = sphi 0, %s441
      %s443 = sphi 0, %s441
      %s444 = sphi 0, %s443
      %s458 = sphi 0, %s444
      %s464 = sphi 0, %s466
      %s467 = sphi 0, %s464
      %s468 = sphi 0, %s467
      %s484 = sphi 0, %s468
      %s490 = sphi 0, %s492
      %s493 = sphi 0, %s490
      %s494 = sphi 0, %s493
      %s510 = sphi 0, %s494
    $region4: #{forward.1} parent=1 // loop_header_branch
      %37 = sbr.rel (%p35) target = $region8
    $region5: #{forward.1} parent=1 // loop_body
      %s39 = ssub.s32 %s34, 1
      %s40 = ssub.s32 %s34, 2
      %s41 = sadd.s32 %s34, 1
      %s43 = sadd.s32 %s42, 1
      %p46 = scmp.eq.s32.totalorder %s34, 3
      %p47 = scmp.ne.s32.totalorder %s42, %s44
      %p48 = scmp.eq.s32.totalorder %s34, 0
      %p49 = por %p47, %p48
      %p50 = scmp.ne.s32.totalorder %s42, %s44
      %p51 = scmp.eq.s32.totalorder %s39, 3
      %p52 = por %p50, %p51
      %p53 = scmp.ne.s32.totalorder %s44, %s45
      %p54 = scmp.eq.s32.totalorder %s39, 0
      %p55 = por %p53, %p54
      %p56 = scmp.ne.s32.totalorder %s44, %s45
      %p57 = scmp.eq.s32.totalorder %s40, 3
      %p58 = por %p56, %p57
      %p60 = scmp.ne.s32.totalorder %s45, %s59
      %p61 = scmp.eq.s32.totalorder %s40, 0
      %p62 = por %p60, %p61
      %s64 = sadd.s32 %s63, 1
      %p67 = scmp.eq.s32.totalorder %s34, 3
      %p68 = scmp.ne.s32.totalorder %s63, %s65
      %p69 = scmp.eq.s32.totalorder %s34, 0
      %p70 = por %p68, %p69
      %p71 = scmp.ne.s32.totalorder %s63, %s65
      %p72 = scmp.eq.s32.totalorder %s39, 3
      %p73 = por %p71, %p72
      %p74 = scmp.ne.s32.totalorder %s65, %s66
      %p75 = scmp.eq.s32.totalorder %s39, 0
      %p76 = por %p74, %p75
      %p77 = scmp.ne.s32.totalorder %s65, %s66
      %p78 = scmp.eq.s32.totalorder %s40, 3
      %p79 = por %p77, %p78
      %p81 = scmp.ne.s32.totalorder %s66, %s80
      %p82 = scmp.eq.s32.totalorder %s40, 0
      %p83 = por %p81, %p82
      %s85 = sadd.s32 %s84, 1
      %p88 = scmp.eq.s32.totalorder %s34, 3
      %p89 = scmp.ne.s32.totalorder %s84, %s86
      %p90 = scmp.eq.s32.totalorder %s34, 0
      %p91 = por %p89, %p90
      %p92 = scmp.ne.s32.totalorder %s84, %s86
      %p93 = scmp.eq.s32.totalorder %s39, 3
      %p94 = por %p92, %p93
      %p95 = scmp.ne.s32.totalorder %s86, %s87
      %p96 = scmp.eq.s32.totalorder %s39, 0
      %p97 = por %p95, %p96
      %p98 = scmp.ne.s32.totalorder %s86, %s87
      %p99 = scmp.eq.s32.totalorder %s40, 3
      %p100 = por %p98, %p99
      %p102 = scmp.ne.s32.totalorder %s87, %s101
      %p103 = scmp.eq.s32.totalorder %s40, 0
      %p104 = por %p102, %p103
      %s106 = sadd.s32 %s105, 1
      %p109 = scmp.eq.s32.totalorder %s34, 3
      %p110 = scmp.ne.s32.totalorder %s105, %s107
      %p111 = scmp.eq.s32.totalorder %s34, 0
      %p112 = por %p110, %p111
      %p113 = scmp.ne.s32.totalorder %s105, %s107
      %p114 = scmp.eq.s32.totalorder %s39, 3
      %p115 = por %p113, %p114
      %p116 = scmp.ne.s32.totalorder %s107, %s108
      %p117 = scmp.eq.s32.totalorder %s39, 0
      %p118 = por %p116, %p117
      %p119 = scmp.ne.s32.totalorder %s107, %s108
      %p120 = scmp.eq.s32.totalorder %s40, 3
      %p121 = por %p119, %p120
      %p123 = scmp.ne.s32.totalorder %s108, %s122
      %p124 = scmp.eq.s32.totalorder %s40, 0
      %p125 = por %p123, %p124
      %s127 = sadd.s32 %s126, 1
      %p130 = scmp.eq.s32.totalorder %s34, 3
      %p131 = scmp.ne.s32.totalorder %s126, %s128
      %p132 = scmp.eq.s32.totalorder %s34, 0
      %p133 = por %p131, %p132
      %p134 = scmp.ne.s32.totalorder %s126, %s128
      %p135 = scmp.eq.s32.totalorder %s39, 3
      %p136 = por %p134, %p135
      %p137 = scmp.ne.s32.totalorder %s128, %s129
      %p138 = scmp.eq.s32.totalorder %s39, 0
      %p139 = por %p137, %p138
      %p140 = scmp.ne.s32.totalorder %s128, %s129
      %p141 = scmp.eq.s32.totalorder %s40, 3
      %p142 = por %p140, %p141
      %p144 = scmp.ne.s32.totalorder %s129, %s143
      %p145 = scmp.eq.s32.totalorder %s40, 0
      %p146 = por %p144, %p145
      %s148 = sadd.s32 %s147, 1
      %p151 = scmp.eq.s32.totalorder %s34, 3
      %p152 = scmp.ne.s32.totalorder %s147, %s149
      %p153 = scmp.eq.s32.totalorder %s34, 0
      %p154 = por %p152, %p153
      %p155 = scmp.ne.s32.totalorder %s147, %s149
      %p156 = scmp.eq.s32.totalorder %s39, 3
      %p157 = por %p155, %p156
      %p158 = scmp.ne.s32.totalorder %s149, %s150
      %p159 = scmp.eq.s32.totalorder %s39, 0
      %p160 = por %p158, %p159
      %p161 = scmp.ne.s32.totalorder %s149, %s150
      %p162 = scmp.eq.s32.totalorder %s40, 3
      %p163 = por %p161, %p162
      %p165 = scmp.ne.s32.totalorder %s150, %s164
      %p166 = scmp.eq.s32.totalorder %s40, 0
      %p167 = por %p165, %p166
      %s169 = sadd.s32 %s168, 1
      %p172 = scmp.eq.s32.totalorder %s34, 3
      %p173 = scmp.ne.s32.totalorder %s168, %s170
      %p174 = scmp.eq.s32.totalorder %s34, 0
      %p175 = por %p173, %p174
      %p176 = scmp.ne.s32.totalorder %s168, %s170
      %p177 = scmp.eq.s32.totalorder %s39, 3
      %p178 = por %p176, %p177
      %p179 = scmp.ne.s32.totalorder %s170, %s171
      %p180 = scmp.eq.s32.totalorder %s39, 0
      %p181 = por %p179, %p180
      %p182 = scmp.ne.s32.totalorder %s170, %s171
      %p183 = scmp.eq.s32.totalorder %s40, 3
      %p184 = por %p182, %p183
      %p186 = scmp.ne.s32.totalorder %s171, %s185
      %p187 = scmp.eq.s32.totalorder %s40, 0
      %p188 = por %p186, %p187
      %s190 = sadd.s32 %s189, 1
      %p193 = scmp.eq.s32.totalorder %s34, 3
      %p194 = scmp.ne.s32.totalorder %s189, %s191
      %p195 = scmp.eq.s32.totalorder %s34, 0
      %p196 = por %p194, %p195
      %p197 = scmp.ne.s32.totalorder %s189, %s191
      %p198 = scmp.eq.s32.totalorder %s39, 3
      %p199 = por %p197, %p198
      %p200 = scmp.ne.s32.totalorder %s191, %s192
      %p201 = scmp.eq.s32.totalorder %s39, 0
      %p202 = por %p200, %p201
      %p203 = scmp.ne.s32.totalorder %s191, %s192
      %p204 = scmp.eq.s32.totalorder %s40, 3
      %p205 = por %p203, %p204
      %p207 = scmp.ne.s32.totalorder %s192, %s206
      %p208 = scmp.eq.s32.totalorder %s40, 0
      %p209 = por %p207, %p208
      %s211 = sadd.s32 %s210, 1
      %p214 = scmp.eq.s32.totalorder %s34, 3
      %p215 = scmp.ne.s32.totalorder %s210, %s212
      %p216 = scmp.eq.s32.totalorder %s34, 0
      %p217 = por %p215, %p216
      %p218 = scmp.ne.s32.totalorder %s210, %s212
      %p219 = scmp.eq.s32.totalorder %s39, 3
      %p220 = por %p218, %p219
      %p221 = scmp.ne.s32.totalorder %s212, %s213
      %p222 = scmp.eq.s32.totalorder %s39, 0
      %p223 = por %p221, %p222
      %p224 = scmp.ne.s32.totalorder %s212, %s213
      %p225 = scmp.eq.s32.totalorder %s40, 3
      %p226 = por %p224, %p225
      %p228 = scmp.ne.s32.totalorder %s213, %s227
      %p229 = scmp.eq.s32.totalorder %s40, 0
      %p230 = por %p228, %p229
      %s232 = sadd.s32 %s231, 1
      %p235 = scmp.eq.s32.totalorder %s34, 3
      %p236 = scmp.ne.s32.totalorder %s231, %s233
      %p237 = scmp.eq.s32.totalorder %s34, 0
      %p238 = por %p236, %p237
      %p239 = scmp.ne.s32.totalorder %s231, %s233
      %p240 = scmp.eq.s32.totalorder %s39, 3
      %p241 = por %p239, %p240
      %p242 = scmp.ne.s32.totalorder %s233, %s234
      %p243 = scmp.eq.s32.totalorder %s39, 0
      %p244 = por %p242, %p243
      %p245 = scmp.ne.s32.totalorder %s233, %s234
      %p246 = scmp.eq.s32.totalorder %s40, 3
      %p247 = por %p245, %p246
      %p249 = scmp.ne.s32.totalorder %s234, %s248
      %p250 = scmp.eq.s32.totalorder %s40, 0
      %p251 = por %p249, %p250
      %s253 = sadd.s32 %s252, 1
      %p256 = scmp.eq.s32.totalorder %s34, 3
      %p257 = scmp.ne.s32.totalorder %s252, %s254
      %p258 = scmp.eq.s32.totalorder %s34, 0
      %p259 = por %p257, %p258
      %p260 = scmp.ne.s32.totalorder %s252, %s254
      %p261 = scmp.eq.s32.totalorder %s39, 3
      %p262 = por %p260, %p261
      %p263 = scmp.ne.s32.totalorder %s254, %s255
      %p264 = scmp.eq.s32.totalorder %s39, 0
      %p265 = por %p263, %p264
      %p266 = scmp.ne.s32.totalorder %s254, %s255
      %p267 = scmp.eq.s32.totalorder %s40, 3
      %p268 = por %p266, %p267
      %p270 = scmp.ne.s32.totalorder %s255, %s269
      %p271 = scmp.eq.s32.totalorder %s40, 0
      %p272 = por %p270, %p271
      %s274 = sadd.s32 %s273, 1
      %p277 = scmp.eq.s32.totalorder %s34, 3
      %p278 = scmp.ne.s32.totalorder %s273, %s275
      %p279 = scmp.eq.s32.totalorder %s34, 0
      %p280 = por %p278, %p279
      %p281 = scmp.ne.s32.totalorder %s273, %s275
      %p282 = scmp.eq.s32.totalorder %s39, 3
      %p283 = por %p281, %p282
      %p284 = scmp.ne.s32.totalorder %s275, %s276
      %p285 = scmp.eq.s32.totalorder %s39, 0
      %p286 = por %p284, %p285
      %p287 = scmp.ne.s32.totalorder %s275, %s276
      %p288 = scmp.eq.s32.totalorder %s40, 3
      %p289 = por %p287, %p288
      %p291 = scmp.ne.s32.totalorder %s276, %s290
      %p292 = scmp.eq.s32.totalorder %s40, 0
      %p293 = por %p291, %p292
      %s295 = sadd.s32 %s294, 1
      %p298 = scmp.eq.s32.totalorder %s34, 3
      %p299 = scmp.ne.s32.totalorder %s294, %s296
      %p300 = scmp.eq.s32.totalorder %s34, 0
      %p301 = por %p299, %p300
      %p302 = scmp.ne.s32.totalorder %s294, %s296
      %p303 = scmp.eq.s32.totalorder %s39, 3
      %p304 = por %p302, %p303
      %p305 = scmp.ne.s32.totalorder %s296, %s297
      %p306 = scmp.eq.s32.totalorder %s39, 0
      %p307 = por %p305, %p306
      %p308 = scmp.ne.s32.totalorder %s296, %s297
      %p309 = scmp.eq.s32.totalorder %s40, 3
      %p310 = por %p308, %p309
      %p312 = scmp.ne.s32.totalorder %s297, %s311
      %p313 = scmp.eq.s32.totalorder %s40, 0
      %p314 = por %p312, %p313
      %s316 = sadd.s32 %s315, 1
      %p319 = scmp.eq.s32.totalorder %s34, 3
      %p320 = scmp.ne.s32.totalorder %s315, %s317
      %p321 = scmp.eq.s32.totalorder %s34, 0
      %p322 = por %p320, %p321
      %p323 = scmp.ne.s32.totalorder %s315, %s317
      %p324 = scmp.eq.s32.totalorder %s39, 3
      %p325 = por %p323, %p324
      %p326 = scmp.ne.s32.totalorder %s317, %s318
      %p327 = scmp.eq.s32.totalorder %s39, 0
      %p328 = por %p326, %p327
      %p329 = scmp.ne.s32.totalorder %s317, %s318
      %p330 = scmp.eq.s32.totalorder %s40, 3
      %p331 = por %p329, %p330
      %p333 = scmp.ne.s32.totalorder %s318, %s332
      %p334 = scmp.eq.s32.totalorder %s40, 0
      %p335 = por %p333, %p334
      %s337 = sadd.s32 %s336, 1
      %p340 = scmp.eq.s32.totalorder %s34, 3
      %p341 = scmp.ne.s32.totalorder %s336, %s338
      %p342 = scmp.eq.s32.totalorder %s34, 0
      %p343 = por %p341, %p342
      %p344 = scmp.ne.s32.totalorder %s336, %s338
      %p345 = scmp.eq.s32.totalorder %s39, 3
      %p346 = por %p344, %p345
      %p347 = scmp.ne.s32.totalorder %s338, %s339
      %p348 = scmp.eq.s32.totalorder %s39, 0
      %p349 = por %p347, %p348
      %p350 = scmp.ne.s32.totalorder %s338, %s339
      %p351 = scmp.eq.s32.totalorder %s40, 3
      %p352 = por %p350, %p351
      %p354 = scmp.ne.s32.totalorder %s339, %s353
      %p355 = scmp.eq.s32.totalorder %s40, 0
      %p356 = por %p354, %p355
      %s358 = sadd.s32 %s357, 1
      %p361 = scmp.eq.s32.totalorder %s34, 3
      %p362 = scmp.ne.s32.totalorder %s357, %s359
      %p363 = scmp.eq.s32.totalorder %s34, 0
      %p364 = por %p362, %p363
      %p365 = scmp.ne.s32.totalorder %s357, %s359
      %p366 = scmp.eq.s32.totalorder %s39, 3
      %p367 = por %p365, %p366
      %p368 = scmp.ne.s32.totalorder %s359, %s360
      %p369 = scmp.eq.s32.totalorder %s39, 0
      %p370 = por %p368, %p369
      %p371 = scmp.ne.s32.totalorder %s359, %s360
      %p372 = scmp.eq.s32.totalorder %s40, 3
      %p373 = por %p371, %p372
      %p375 = scmp.ne.s32.totalorder %s360, %s374
      %p376 = scmp.eq.s32.totalorder %s40, 0
      %p377 = por %p375, %p376
      %s379 = sadd.s32 %s378, 1
      %p382 = scmp.eq.s32.totalorder %s34, 3
      %p383 = scmp.ne.s32.totalorder %s378, %s380
      %p384 = scmp.eq.s32.totalorder %s34, 0
      %p385 = por %p383, %p384
      %p386 = scmp.ne.s32.totalorder %s378, %s380
      %p387 = scmp.eq.s32.totalorder %s39, 3
      %p388 = por %p386, %p387
      %p389 = scmp.ne.s32.totalorder %s380, %s381
      %p390 = scmp.eq.s32.totalorder %s39, 0
      %p391 = por %p389, %p390
      %p392 = scmp.ne.s32.totalorder %s380, %s381
      %p393 = scmp.eq.s32.totalorder %s40, 3
      %p394 = por %p392, %p393
      %p396 = scmp.ne.s32.totalorder %s381, %s395
      %p397 = scmp.eq.s32.totalorder %s40, 0
      %p398 = por %p396, %p397
      %s400 = sadd.s32 %s399, 1
      %p403 = scmp.eq.s32.totalorder %s34, 3
      %p404 = scmp.ne.s32.totalorder %s399, %s401
      %p405 = scmp.eq.s32.totalorder %s34, 0
      %p406 = por %p404, %p405
      %p407 = scmp.ne.s32.totalorder %s399, %s401
      %p408 = scmp.eq.s32.totalorder %s39, 3
      %p409 = por %p407, %p408
      %p410 = scmp.ne.s32.totalorder %s401, %s402
      %p411 = scmp.eq.s32.totalorder %s39, 0
      %p412 = por %p410, %p411
      %p413 = scmp.ne.s32.totalorder %s401, %s402
      %p414 = scmp.eq.s32.totalorder %s40, 3
      %p415 = por %p413, %p414
      %p417 = scmp.ne.s32.totalorder %s402, %s416
      %p418 = scmp.eq.s32.totalorder %s40, 0
      %p419 = por %p417, %p418
      %s421 = sadd.s32 %s420, 1
      %p424 = scmp.eq.s32.totalorder %s34, 3
      %p425 = scmp.ne.s32.totalorder %s420, %s422
      %p426 = scmp.eq.s32.totalorder %s34, 0
      %p427 = por %p425, %p426
      %p428 = scmp.ne.s32.totalorder %s420, %s422
      %p429 = scmp.eq.s32.totalorder %s39, 3
      %p430 = por %p428, %p429
      %p431 = scmp.ne.s32.totalorder %s422, %s423
      %p432 = scmp.eq.s32.totalorder %s39, 0
      %p433 = por %p431, %p432
      %p434 = scmp.ne.s32.totalorder %s422, %s423
      %p435 = scmp.eq.s32.totalorder %s40, 3
      %p436 = por %p434, %p435
      %p438 = scmp.ne.s32.totalorder %s423, %s437
      %p439 = scmp.eq.s32.totalorder %s40, 0
      %p440 = por %p438, %p439
      %s442 = sadd.s32 %s441, 1
      %p445 = scmp.eq.s32.totalorder %s34, 3
      %p446 = scmp.ne.s32.totalorder %s441, %s443
      %p447 = scmp.eq.s32.totalorder %s34, 0
      %p448 = por %p446, %p447
      %p449 = scmp.ne.s32.totalorder %s441, %s443
      %p450 = scmp.eq.s32.totalorder %s39, 3
      %p451 = por %p449, %p450
      %p452 = scmp.ne.s32.totalorder %s443, %s444
      %p453 = scmp.eq.s32.totalorder %s39, 0
      %p454 = por %p452, %p453
      %p455 = scmp.ne.s32.totalorder %s443, %s444
      %p456 = scmp.eq.s32.totalorder %s40, 3
      %p457 = por %p455, %p456
      %p459 = scmp.ne.s32.totalorder %s444, %s458
      %p460 = scmp.eq.s32.totalorder %s40, 0
      %p461 = por %p459, %p460
      %s462 = ssub.s32 %s34, %s41
      %p463 = scmp.eq.s32.totalorder %s462, 0
      %s465 = sadd.s32 %s464, 1
      %s466 = scalar_select %p463, %s464, %s465
      %p469 = pneg %p463
      %p470 = scmp.eq.s32.totalorder %s34, 3
      %p471 = por %p469, %p470
      %p472 = scmp.ne.s32.totalorder %s464, %s467
      %p473 = scmp.eq.s32.totalorder %s34, 0
      %p474 = por %p472, %p473
      %p475 = scmp.ne.s32.totalorder %s464, %s467
      %p476 = scmp.eq.s32.totalorder %s39, 3
      %p477 = por %p475, %p476
      %p478 = scmp.ne.s32.totalorder %s467, %s468
      %p479 = scmp.eq.s32.totalorder %s39, 0
      %p480 = por %p478, %p479
      %p481 = scmp.ne.s32.totalorder %s467, %s468
      %p482 = scmp.eq.s32.totalorder %s40, 3
      %p483 = por %p481, %p482
      %p485 = scmp.ne.s32.totalorder %s468, %s484
      %p486 = scmp.eq.s32.totalorder %s40, 0
      %p487 = por %p485, %p486
      %s488 = ssub.s32 %s34, %s41
      %p489 = scmp.eq.s32.totalorder %s488, 0
      %s491 = sadd.s32 %s490, 1
      %s492 = scalar_select %p489, %s490, %s491
      %p495 = pneg %p489
      %p496 = scmp.eq.s32.totalorder %s34, 3
      %p497 = por %p495, %p496
      %p498 = scmp.ne.s32.totalorder %s490, %s493
      %p499 = scmp.eq.s32.totalorder %s34, 0
      %p500 = por %p498, %p499
      %p501 = scmp.ne.s32.totalorder %s490, %s493
      %p502 = scmp.eq.s32.totalorder %s39, 3
      %p503 = por %p501, %p502
      %p504 = scmp.ne.s32.totalorder %s493, %s494
      %p505 = scmp.eq.s32.totalorder %s39, 0
      %p506 = por %p504, %p505
      %p507 = scmp.ne.s32.totalorder %s493, %s494
      %p508 = scmp.eq.s32.totalorder %s40, 3
      %p509 = por %p507, %p508
      %p511 = scmp.ne.s32.totalorder %s494, %s510
      %p512 = scmp.eq.s32.totalorder %s40, 0
      %p513 = por %p511, %p512
      %p514 = scmp.le.s32.totalorder 1, %s34
      %p515 = scmp.lt.s32.totalorder %s34, 5
      %p516 = pnand %p514, %p515
      %p517 = pneg %p516
      // Predicated region
      $region9: #{forward.1} parent=5 // pred_check
        _
      $region10: #{forward.1} parent=5 // pred_check_branch
        %519 = sbr.rel (%p516) target = $region12
      $region11: #{forward.1} parent=5 // pred_region
        %s520 = ssub.s32 %s34, 1
        // Predicated region
        $region13: #{forward.1} parent=11 // pred_check
          %p521 = pneg %p55
        $region14: #{forward.1} parent=11 // pred_check_branch
          %523 = sbr.rel (%p521) target = $region16
        $region15: #{forward.1} parent=11 // pred_region
          %s525 = ssub.s32 128, 128
          %526 = vsyncadd [#allocation5], %s525
          %s528 = sshll.u32 [#allocation4], 4
          %s529 = int_to_ptr.vmem [resolvable:$true] %s528
          %531 = dma.hbm_to_vmem [thread:$0]  %s0, 128, %s529, [#allocation5]
        $region16: #{forward.1} parent=11 // pred_fallthru
          _
        // Predicated region
        $region17: #{forward.1} parent=11 // pred_check
          %p532 = pneg %p76
        $region18: #{forward.1} parent=11 // pred_check_branch
          %534 = sbr.rel (%p532) target = $region20
        $region19: #{forward.1} parent=11 // pred_region
          _
        $region20: #{forward.1} parent=11 // pred_fallthru
          _
        // Predicated region
        $region21: #{forward.1} parent=11 // pred_check
          %p535 = pneg %p97
        $region22: #{forward.1} parent=11 // pred_check_branch
          %537 = sbr.rel (%p535) target = $region24
        $region23: #{forward.1} parent=11 // pred_region
          _
        $region24: #{forward.1} parent=11 // pred_fallthru
          _
        // Predicated region
        $region25: #{forward.1} parent=11 // pred_check
          %p538 = pneg %p118
        $region26: #{forward.1} parent=11 // pred_check_branch
          %540 = sbr.rel (%p538) target = $region28
        $region27: #{forward.1} parent=11 // pred_region
          _
        $region28: #{forward.1} parent=11 // pred_fallthru
          _
        // Predicated region
        $region29: #{forward.1} parent=11 // pred_check
          %p541 = pneg %p139
        $region30: #{forward.1} parent=11 // pred_check_branch
          %543 = sbr.rel (%p541) target = $region32
        $region31: #{forward.1} parent=11 // pred_region
          _
        $region32: #{forward.1} parent=11 // pred_fallthru
          _
        // Predicated region
        $region33: #{forward.1} parent=11 // pred_check
          %p544 = pneg %p160
        $region34: #{forward.1} parent=11 // pred_check_branch
          %546 = sbr.rel (%p544) target = $region36
        $region35: #{forward.1} parent=11 // pred_region
          %s548 = ssub.s32 16, 16
          %549 = vsyncadd [#allocation7], %s548
          %s551 = sshll.u32 [#allocation6], 4
          %s552 = int_to_ptr.vmem [resolvable:$true] %s551
          %554 = dma.hbm_to_vmem [thread:$0]  %s5, 16, %s552, [#allocation7]
        $region36: #{forward.1} parent=11 // pred_fallthru
          _
        // Predicated region
        $region37: #{forward.1} parent=11 // pred_check
          %p555 = pneg %p181
        $region38: #{forward.1} parent=11 // pred_check_branch
          %557 = sbr.rel (%p555) target = $region40
        $region39: #{forward.1} parent=11 // pred_region
          _
        $region40: #{forward.1} parent=11 // pred_fallthru
          _
        // Predicated region
        $region41: #{forward.1} parent=11 // pred_check
          %p558 = pneg %p202
        $region42: #{forward.1} parent=11 // pred_check_branch
          %560 = sbr.rel (%p558) target = $region44
        $region43: #{forward.1} parent=11 // pred_region
          _
        $region44: #{forward.1} parent=11 // pred_fallthru
          _
        // Predicated region
        $region45: #{forward.1} parent=11 // pred_check
          %p561 = pneg %p223
        $region46: #{forward.1} parent=11 // pred_check_branch
          %563 = sbr.rel (%p561) target = $region48
        $region47: #{forward.1} parent=11 // pred_region
          %s565 = ssub.s32 16, 16
          %566 = vsyncadd [#allocation7], %s565
          %s568 = sshll.u32 [#allocation8], 4
          %s569 = int_to_ptr.vmem [resolvable:$true] %s568
          %571 = dma.hbm_to_vmem [thread:$0]  %s8, 16, %s569, [#allocation7]
        $region48: #{forward.1} parent=11 // pred_fallthru
          _
        // Predicated region
        $region49: #{forward.1} parent=11 // pred_check
          %p572 = pneg %p244
        $region50: #{forward.1} parent=11 // pred_check_branch
          %574 = sbr.rel (%p572) target = $region52
        $region51: #{forward.1} parent=11 // pred_region
          _
        $region52: #{forward.1} parent=11 // pred_fallthru
          _
        // Predicated region
        $region53: #{forward.1} parent=11 // pred_check
          %p575 = pneg %p265
        $region54: #{forward.1} parent=11 // pred_check_branch
          %577 = sbr.rel (%p575) target = $region56
        $region55: #{forward.1} parent=11 // pred_region
          %s579 = ssub.s32 16, 16
          %580 = vsyncadd [#allocation10], %s579
          %s582 = sshll.u32 [#allocation9], 4
          %s583 = int_to_ptr.vmem [resolvable:$true] %s582
          %585 = dma.hbm_to_vmem [thread:$0]  %s10, 16, %s583, [#allocation10]
        $region56: #{forward.1} parent=11 // pred_fallthru
          _
        // Predicated region
        $region57: #{forward.1} parent=11 // pred_check
          %p586 = pneg %p286
        $region58: #{forward.1} parent=11 // pred_check_branch
          %588 = sbr.rel (%p586) target = $region60
        $region59: #{forward.1} parent=11 // pred_region
          %s590 = ssub.s32 256, 256
          %591 = vsyncadd [#allocation10], %s590
          %s592 = sshll.u32 [#allocation11], 4
          %s593 = int_to_ptr.vmem [resolvable:$true] %s592
          %598 = dma.hbm_to_vmem [thread:$0]  %s11, 256, %s593, [#allocation10], 128, 128, 8
        $region60: #{forward.1} parent=11 // pred_fallthru
          _
        // Predicated region
        $region61: #{forward.1} parent=11 // pred_check
          %p599 = pneg %p307
        $region62: #{forward.1} parent=11 // pred_check_branch
          %601 = sbr.rel (%p599) target = $region64
        $region63: #{forward.1} parent=11 // pred_region
          %s603 = ssub.s32 1024, 1024
          %604 = vsyncadd [#allocation13], %s603
          %s605 = sshll.u32 [#allocation12], 4
          %s606 = int_to_ptr.vmem [resolvable:$true] %s605
          %611 = dma.hbm_to_vmem [thread:$0]  %s12, 1024, %s606, [#allocation13], 128, 128, 8
        $region64: #{forward.1} parent=11 // pred_fallthru
          _
        // Predicated region
        $region65: #{forward.1} parent=11 // pred_check
          %p612 = pneg %p328
        $region66: #{forward.1} parent=11 // pred_check_branch
          %614 = sbr.rel (%p612) target = $region68
        $region67: #{forward.1} parent=11 // pred_region
          %s616 = ssub.s32 1024, 1024
          %617 = vsyncadd [#allocation13], %s616
          %s618 = sshll.u32 [#allocation14], 4
          %s619 = int_to_ptr.vmem [resolvable:$true] %s618
          %624 = dma.hbm_to_vmem [thread:$0]  %s13, 1024, %s619, [#allocation13], 128, 128, 8
        $region68: #{forward.1} parent=11 // pred_fallthru
          _
        // Predicated region
        $region69: #{forward.1} parent=11 // pred_check
          %p625 = pneg %p349
        $region70: #{forward.1} parent=11 // pred_check_branch
          %627 = sbr.rel (%p625) target = $region72
        $region71: #{forward.1} parent=11 // pred_region
          %s629 = ssub.s32 1024, 1024
          %630 = vsyncadd [#allocation16], %s629
          %s631 = sshll.u32 [#allocation15], 4
          %s632 = int_to_ptr.vmem [resolvable:$true] %s631
          %637 = dma.hbm_to_vmem [thread:$0]  %s14, 1024, %s632, [#allocation16], 128, 128, 8
        $region72: #{forward.1} parent=11 // pred_fallthru
          _
        // Predicated region
        $region73: #{forward.1} parent=11 // pred_check
          %p638 = pneg %p370
        $region74: #{forward.1} parent=11 // pred_check_branch
          %640 = sbr.rel (%p638) target = $region76
        $region75: #{forward.1} parent=11 // pred_region
          %s642 = ssub.s32 16, 16
          %643 = vsyncadd [#allocation16], %s642
          %s645 = sshll.u32 [#allocation17], 4
          %s646 = int_to_ptr.vmem [resolvable:$true] %s645
          %648 = dma.hbm_to_vmem [thread:$0]  %s15, 16, %s646, [#allocation16]
        $region76: #{forward.1} parent=11 // pred_fallthru
          _
        // Predicated region
        $region77: #{forward.1} parent=11 // pred_check
          %p649 = pneg %p391
        $region78: #{forward.1} parent=11 // pred_check_branch
          %651 = sbr.rel (%p649) target = $region80
        $region79: #{forward.1} parent=11 // pred_region
          _
        $region80: #{forward.1} parent=11 // pred_fallthru
          _
        // Predicated region
        $region81: #{forward.1} parent=11 // pred_check
          %p652 = pneg %p412
        $region82: #{forward.1} parent=11 // pred_check_branch
          %654 = sbr.rel (%p652) target = $region84
        $region83: #{forward.1} parent=11 // pred_region
          _
        $region84: #{forward.1} parent=11 // pred_fallthru
          _
        // Predicated region
        $region85: #{forward.1} parent=11 // pred_check
          %p655 = pneg %p433
        $region86: #{forward.1} parent=11 // pred_check_branch
          %657 = sbr.rel (%p655) target = $region88
        $region87: #{forward.1} parent=11 // pred_region
          _
        $region88: #{forward.1} parent=11 // pred_fallthru
          _
        // Predicated region
        $region89: #{forward.1} parent=11 // pred_check
          %p658 = pneg %p454
        $region90: #{forward.1} parent=11 // pred_check_branch
          %660 = sbr.rel (%p658) target = $region92
        $region91: #{forward.1} parent=11 // pred_region
          %s662 = ssub.s32 8192, 8192
          %663 = vsyncadd [#allocation19], %s662
          %s664 = sshll.u32 [#allocation18], 4
          %s665 = int_to_ptr.vmem [resolvable:$true] %s664
          %670 = dma.hbm_to_vmem [thread:$0]  %s19, 8192, %s665, [#allocation19], 256, 256, 16
        $region92: #{forward.1} parent=11 // pred_fallthru
          _
      $region12: #{forward.1} parent=5 // pred_fallthru
        _
      %p671 = scmp.lt.s32.totalorder %s34, 4
      // Predicated region
      $region93: #{forward.1} parent=5 // pred_check
        %p672 = pneg %p671
      $region94: #{forward.1} parent=5 // pred_check_branch
        %674 = sbr.rel (%p672) target = $region96
      $region95: #{forward.1} parent=5 // pred_region
        _
      $region96: #{forward.1} parent=5 // pred_fallthru
        _
      %p675 = scmp.le.s32.totalorder 1, %s34
      %p676 = scmp.lt.s32.totalorder %s34, 5
      %p677 = pnand %p675, %p676
      %p678 = pneg %p677
      // Predicated region
      $region97: #{forward.1} parent=5 // pred_check
        _
      $region98: #{forward.1} parent=5 // pred_check_branch
        %680 = sbr.rel (%p677) target = $region100
      $region99: #{forward.1} parent=5 // pred_region
        %s681 = ssub.s32 %s34, 1
        // Predicated region
        $region101: #{forward.1} parent=99 // pred_check
          %p682 = pneg %p55
        $region102: #{forward.1} parent=99 // pred_check_branch
          %684 = sbr.rel (%p682) target = $region104
        $region103: #{forward.1} parent=99 // pred_region
          %685 = dma.done [#allocation5], 128
        $region104: #{forward.1} parent=99 // pred_fallthru
          _
        // Predicated region
        $region105: #{forward.1} parent=99 // pred_check
          %p686 = pneg %p160
        $region106: #{forward.1} parent=99 // pred_check_branch
          %688 = sbr.rel (%p686) target = $region108
        $region107: #{forward.1} parent=99 // pred_region
          %689 = dma.done [#allocation7], 16
        $region108: #{forward.1} parent=99 // pred_fallthru
          _
        // Predicated region
        $region109: #{forward.1} parent=99 // pred_check
          %p690 = pneg %p223
        $region110: #{forward.1} parent=99 // pred_check_branch
          %692 = sbr.rel (%p690) target = $region112
        $region111: #{forward.1} parent=99 // pred_region
          %693 = dma.done [#allocation7], 16
        $region112: #{forward.1} parent=99 // pred_fallthru
          _
        // Predicated region
        $region113: #{forward.1} parent=99 // pred_check
          %p694 = pneg %p265
        $region114: #{forward.1} parent=99 // pred_check_branch
          %696 = sbr.rel (%p694) target = $region116
        $region115: #{forward.1} parent=99 // pred_region
          %697 = dma.done [#allocation10], 16
        $region116: #{forward.1} parent=99 // pred_fallthru
          _
        // Predicated region
        $region117: #{forward.1} parent=99 // pred_check
          %p698 = pneg %p286
        $region118: #{forward.1} parent=99 // pred_check_branch
          %700 = sbr.rel (%p698) target = $region120
        $region119: #{forward.1} parent=99 // pred_region
          %701 = dma.done [#allocation10], 256
        $region120: #{forward.1} parent=99 // pred_fallthru
          _
        // Predicated region
        $region121: #{forward.1} parent=99 // pred_check
          %p702 = pneg %p307
        $region122: #{forward.1} parent=99 // pred_check_branch
          %704 = sbr.rel (%p702) target = $region124
        $region123: #{forward.1} parent=99 // pred_region
          %705 = dma.done [#allocation13], 1024
        $region124: #{forward.1} parent=99 // pred_fallthru
          _
        // Predicated region
        $region125: #{forward.1} parent=99 // pred_check
          %p706 = pneg %p328
        $region126: #{forward.1} parent=99 // pred_check_branch
          %708 = sbr.rel (%p706) target = $region128
        $region127: #{forward.1} parent=99 // pred_region
          %709 = dma.done [#allocation13], 1024
        $region128: #{forward.1} parent=99 // pred_fallthru
          _
        // Predicated region
        $region129: #{forward.1} parent=99 // pred_check
          %p710 = pneg %p349
        $region130: #{forward.1} parent=99 // pred_check_branch
          %712 = sbr.rel (%p710) target = $region132
        $region131: #{forward.1} parent=99 // pred_region
          %713 = dma.done [#allocation16], 1024
        $region132: #{forward.1} parent=99 // pred_fallthru
          _
        // Predicated region
        $region133: #{forward.1} parent=99 // pred_check
          %p714 = pneg %p370
        $region134: #{forward.1} parent=99 // pred_check_branch
          %716 = sbr.rel (%p714) target = $region136
        $region135: #{forward.1} parent=99 // pred_region
          %717 = dma.done [#allocation16], 16
        $region136: #{forward.1} parent=99 // pred_fallthru
          _
        // Predicated region
        $region137: #{forward.1} parent=99 // pred_check
          %p718 = pneg %p454
        $region138: #{forward.1} parent=99 // pred_check_branch
          %720 = sbr.rel (%p718) target = $region140
        $region139: #{forward.1} parent=99 // pred_region
          %721 = dma.done [#allocation19], 8192
        $region140: #{forward.1} parent=99 // pred_fallthru
          _
        %p722 = pneg %p55
        %p723 = pneg %p52
        %p724 = pneg %p76
        %p725 = pneg %p73
        %p726 = pneg %p97
        %p727 = pneg %p94
        %p728 = pneg %p118
        %p729 = pneg %p115
        %p730 = pneg %p139
        %p731 = pneg %p136
        %p732 = pneg %p160
        %p733 = pneg %p157
        %p734 = pneg %p181
        %p735 = pneg %p178
        %p736 = pneg %p202
        %p737 = pneg %p199
        %p738 = pneg %p223
        %p739 = pneg %p220
        %p740 = pneg %p244
        %p741 = pneg %p241
        %p742 = pneg %p265
        %p743 = pneg %p262
        %p744 = pneg %p286
        %p745 = pneg %p283
        %p746 = pneg %p307
        %p747 = pneg %p304
        %p748 = pneg %p328
        %p749 = pneg %p325
        %p750 = pneg %p349
        %p751 = pneg %p346
        %p752 = pneg %p370
        %p753 = pneg %p367
        %p754 = pneg %p391
        %p755 = pneg %p388
        %p756 = pneg %p412
        %p757 = pneg %p409
        %p758 = pneg %p433
        %p759 = pneg %p430
        %p760 = pneg %p454
        %p761 = pneg %p451
        %p762 = pneg %p480
        %p763 = pneg %p477
        %p764 = scmp.lt.s32.totalorder %s39, 3
        %s765 = scalar_select %p764, %s39, 3
        %s766 = smul.addr %s765, 8
        %s767 = scalar_lea.vmem %s20, %s766
        %p768 = pneg %p506
        %p769 = pneg %p503
        %p770 = scmp.lt.s32.totalorder %s39, 3
        %s771 = scalar_select %p770, %s39, 3
        %s772 = smul.addr %s771, 8
        %s773 = scalar_lea.vmem %s21, %s772
        %p774 = scmp.lt.s32.totalorder %s39, 3
        %s775 = scalar_select %p774, %s39, 3
        %s776 = smul.addr %s775, 8
        %s777 = scalar_lea.vmem %s20, %s776
        %p778 = scmp.lt.s32.totalorder %s39, 3
        %s779 = scalar_select %p778, %s39, 3
        %s780 = smul.addr %s779, 8
        %s781 = scalar_lea.vmem %s21, %s780
        %p783 = scmp.eq.s32.totalorder %s39, 0
        // Predicated region
        $region141: #{forward.1} parent=99 // pred_check
          %p784 = pneg %p783
        $region142: #{forward.1} parent=99 // pred_check_branch
          %786 = sbr.rel (%p784) target = $region144
        $region143: #{forward.1} parent=99 // pred_region
          %v787 = vld [vmem:[#allocation4] sm:$0xff]
          %v788 = vld [vmem:[%s2] sm:$0xff]
          %v789 = vld [vmem:[%s2 + $0x8] sm:$0xff]
          %v790 = vld [vmem:[%s2 + $0x10] sm:$0xff]
          %v791 = vld [vmem:[%s2 + $0x18] sm:$0xff]
          %v792 = vld [vmem:[%s2 + $0x20] sm:$0xff]
          %v793 = vld [vmem:[%s2 + $0x28] sm:$0xff]
          %v794 = vld [vmem:[%s2 + $0x30] sm:$0xff]
          %v795 = vld [vmem:[%s2 + $0x38] sm:$0xff]
          %v796 = vld [vmem:[%s3] sm:$0x1]
          %v798 = vlaneseq
          %v799 = vshrl.u32 %v798, 7
          %v800 = vsub.s32 0, %v799
          %v801 = vrot.slane %v796, %v800
          %vm803 = vcmask 523264
          %v805 = vsel %vm803, %v787, 0
          %807 = vmatprep.subr.mxu0 0.0
          %808 = vmatpush1.msra.mxu0 0.0
          %809 = vmatprep.subr.mxu0 0.0
          %810 = vmatpush1.msra.mxu0 0.0
          %811 = vmatprep.subr.mxu0 0.0
          %812 = vmatpush1.msra.mxu0 0.0
          %813 = vmatprep.subr.mxu0 0.0
          %814 = vmatpush1.msra.mxu0 0.0
          %815 = vmatprep.subr.mxu0 0.0
          %816 = vmatpush1.msra.mxu0 0.0
          %817 = vmatprep.subr.mxu0 0.0
          %818 = vmatpush1.msra.mxu0 0.0
          %819 = vmatprep.subr.mxu0 0.0
          %820 = vmatpush1.msra.mxu0 0.0
          %821 = vmatprep.subr.mxu0 0.0
          %822 = vmatpush1.msra.mxu0 0.0
          %823 = vmatprep.subr.mxu0 0.0
          %824 = vmatpush1.msra.mxu0 %v795
          %825 = vmatprep.subr.mxu0 0.0
          %826 = vmatpush1.msra.mxu0 %v794
          %827 = vmatprep.subr.mxu0 0.0
          %828 = vmatpush1.msra.mxu0 %v793
          %829 = vmatprep.subr.mxu0 0.0
          %830 = vmatpush1.msra.mxu0 %v792
          %831 = vmatprep.subr.mxu0 0.0
          %832 = vmatpush1.msra.mxu0 %v791
          %833 = vmatprep.subr.mxu0 0.0
          %834 = vmatpush1.msra.mxu0 %v790
          %835 = vmatprep.subr.mxu0 0.0
          %836 = vmatpush1.msra.mxu0 %v789
          %837 = vmatprep.subr.mxu0 0.0
          %838 = vmatpush1.msra.mxu0 %v788
          %839 = vmatprep.subr.mxu0 0.0
          %840 = vmatpush2.msra.mxu0 0.0
          %841 = vmatprep.subr.mxu0 0.0
          %842 = vmatpush2.msra.mxu0 0.0
          %843 = vmatprep.subr.mxu0 0.0
          %844 = vmatpush2.msra.mxu0 0.0
          %845 = vmatprep.subr.mxu0 0.0
          %846 = vmatpush2.msra.mxu0 0.0
          %847 = vmatprep.subr.mxu0 0.0
          %848 = vmatpush2.msra.mxu0 0.0
          %849 = vmatprep.subr.mxu0 0.0
          %850 = vmatpush2.msra.mxu0 0.0
          %851 = vmatprep.subr.mxu0 0.0
          %852 = vmatpush2.msra.mxu0 0.0
          %853 = vmatprep.subr.mxu0 0.0
          %854 = vmatpush2.msra.mxu0 0.0
          %855 = vmatprep.subr.mxu0 0.0
          %856 = vmatpush2.msra.mxu0 0.0
          %857 = vmatprep.subr.mxu0 0.0
          %858 = vmatpush2.msra.mxu0 0.0
          %859 = vmatprep.subr.mxu0 0.0
          %860 = vmatpush2.msra.mxu0 0.0
          %861 = vmatprep.subr.mxu0 0.0
          %862 = vmatpush2.msra.mxu0 0.0
          %863 = vmatprep.subr.mxu0 0.0
          %864 = vmatpush2.msra.mxu0 0.0
          %865 = vmatprep.subr.mxu0 0.0
          %866 = vmatpush2.msra.mxu0 0.0
          %867 = vmatprep.subr.mxu0 0.0
          %868 = vmatpush2.msra.mxu0 0.0
          %869 = vmatprep.subr.mxu0 0.0
          %870 = vmatpush2.msra.mxu0 0.0
          %871 = vmatprep.mubr.f32.mxu0 0.0
          %872 = vmatmul.mubr.f32.gmra.mxu0 %v805
          %v873 = vpop.f32.mrf.mxu0
          %v874 = vadd.f32 %v801, %v873
          %v875 = vpop.f32.mrf.mxu0
          %876 = vdwg.mxu0
          %877 = vst.msk [vmem:[#allocation2] sm:$0xff] %vm803, %v874
          %v878 = vld [vmem:[%s1] sm:$0xff]
          %v879 = vld [vmem:[%s1 + $0x8] sm:$0xff]
          %880 = vst [vmem:[#allocation3] sm:$0xff] %v878
          %881 = vst [vmem:[#allocation3 + $0x8] sm:$0xff] %v879
        $region144: #{forward.1} parent=99 // pred_fallthru
          _
        %v882 = vld [vmem:[#allocation3] sm:$0xff]
        %v883 = vld [vmem:[#allocation3 + $0x8] sm:$0xff]
        %v884 = vld [vmem:[#allocation2] sm:$0xff]
        %v885 = vld [vmem:[%s18] sm:$0xff]
        %v886 = vld [vmem:[%s18 + $0x8] sm:$0xff]
        %v887 = vld [vmem:[%s18 + $0x10] sm:$0xff]
        %v888 = vld [vmem:[%s18 + $0x18] sm:$0xff]
        %v889 = vld [vmem:[%s18 + $0x20] sm:$0xff]
        %v890 = vld [vmem:[%s18 + $0x28] sm:$0xff]
        %v891 = vld [vmem:[%s18 + $0x30] sm:$0xff]
        %v892 = vld [vmem:[%s18 + $0x38] sm:$0xff]
        %v893 = vld [vmem:[%s18 + $0x40] sm:$0xff]
        %v894 = vld [vmem:[%s18 + $0x48] sm:$0xff]
        %v895 = vld [vmem:[%s18 + $0x50] sm:$0xff]
        %v896 = vld [vmem:[%s18 + $0x58] sm:$0xff]
        %v897 = vld [vmem:[%s18 + $0x60] sm:$0xff]
        %v898 = vld [vmem:[%s18 + $0x68] sm:$0xff]
        %v899 = vld [vmem:[%s18 + $0x70] sm:$0xff]
        %v900 = vld [vmem:[%s18 + $0x78] sm:$0xff]
        %v901 = vld [vmem:[%s18 + $0x80] sm:$0xff]
        %v902 = vld [vmem:[%s18 + $0x88] sm:$0xff]
        %v903 = vld [vmem:[%s18 + $0x90] sm:$0xff]
        %v904 = vld [vmem:[%s18 + $0x98] sm:$0xff]
        %v905 = vld [vmem:[%s18 + $0xa0] sm:$0xff]
        %v906 = vld [vmem:[%s18 + $0xa8] sm:$0xff]
        %v907 = vld [vmem:[%s18 + $0xb0] sm:$0xff]
        %v908 = vld [vmem:[%s18 + $0xb8] sm:$0xff]
        %v909 = vld [vmem:[%s18 + $0xc0] sm:$0xff]
        %v910 = vld [vmem:[%s18 + $0xc8] sm:$0xff]
        %v911 = vld [vmem:[%s18 + $0xd0] sm:$0xff]
        %v912 = vld [vmem:[%s18 + $0xd8] sm:$0xff]
        %v913 = vld [vmem:[%s18 + $0xe0] sm:$0xff]
        %v914 = vld [vmem:[%s18 + $0xe8] sm:$0xff]
        %v915 = vld [vmem:[%s18 + $0xf0] sm:$0xff]
        %v916 = vld [vmem:[%s18 + $0xf8] sm:$0xff]
        %917 = vmatprep.subr.mxu0 0.0
        %918 = vmatpush1.msra.mxu0 %v900
        %919 = vmatprep.subr.mxu0 0.0
        %920 = vmatpush1.msra.mxu0 %v899
        %921 = vmatprep.subr.mxu0 0.0
        %922 = vmatpush1.msra.mxu0 %v898
        %923 = vmatprep.subr.mxu0 0.0
        %924 = vmatpush1.msra.mxu0 %v897
        %925 = vmatprep.subr.mxu0 0.0
        %926 = vmatpush1.msra.mxu0 %v896
        %927 = vmatprep.subr.mxu0 0.0
        %928 = vmatpush1.msra.mxu0 %v895
        %929 = vmatprep.subr.mxu0 0.0
        %930 = vmatpush1.msra.mxu0 %v894
        %931 = vmatprep.subr.mxu0 0.0
        %932 = vmatpush1.msra.mxu0 %v893
        %933 = vmatprep.subr.mxu0 0.0
        %934 = vmatpush1.msra.mxu0 %v892
        %935 = vmatprep.subr.mxu0 0.0
        %936 = vmatpush1.msra.mxu0 %v891
        %937 = vmatprep.subr.mxu0 0.0
        %938 = vmatpush1.msra.mxu0 %v890
        %939 = vmatprep.subr.mxu0 0.0
        %940 = vmatpush1.msra.mxu0 %v889
        %941 = vmatprep.subr.mxu0 0.0
        %942 = vmatpush1.msra.mxu0 %v888
        %943 = vmatprep.subr.mxu0 0.0
        %944 = vmatpush1.msra.mxu0 %v887
        %945 = vmatprep.subr.mxu0 0.0
        %946 = vmatpush1.msra.mxu0 %v886
        %947 = vmatprep.subr.mxu0 0.0
        %948 = vmatpush1.msra.mxu0 %v885
        %949 = vmatprep.subr.mxu0 0.0
        %950 = vmatpush2.msra.mxu0 %v916
        %951 = vmatprep.subr.mxu0 0.0
        %952 = vmatpush2.msra.mxu0 %v915
        %953 = vmatprep.subr.mxu0 0.0
        %954 = vmatpush2.msra.mxu0 %v914
        %955 = vmatprep.subr.mxu0 0.0
        %956 = vmatpush2.msra.mxu0 %v913
        %957 = vmatprep.subr.mxu0 0.0
        %958 = vmatpush2.msra.mxu0 %v912
        %959 = vmatprep.subr.mxu0 0.0
        %960 = vmatpush2.msra.mxu0 %v911
        %961 = vmatprep.subr.mxu0 0.0
        %962 = vmatpush2.msra.mxu0 %v910
        %963 = vmatprep.subr.mxu0 0.0
        %964 = vmatpush2.msra.mxu0 %v909
        %965 = vmatprep.subr.mxu0 0.0
        %966 = vmatpush2.msra.mxu0 %v908
        %967 = vmatprep.subr.mxu0 0.0
        %968 = vmatpush2.msra.mxu0 %v907
        %969 = vmatprep.subr.mxu0 0.0
        %970 = vmatpush2.msra.mxu0 %v906
        %971 = vmatprep.subr.mxu0 0.0
        %972 = vmatpush2.msra.mxu0 %v905
        %973 = vmatprep.subr.mxu0 0.0
        %974 = vmatpush2.msra.mxu0 %v904
        %975 = vmatprep.subr.mxu0 0.0
        %976 = vmatpush2.msra.mxu0 %v903
        %977 = vmatprep.subr.mxu0 0.0
        %978 = vmatpush2.msra.mxu0 %v902
        %979 = vmatprep.subr.mxu0 0.0
        %980 = vmatpush2.msra.mxu0 %v901
        %981 = vmatprep.mubr.f32.mxu0 %v883
        %982 = vmatmul.mubr.f32.gmra.mxu0 %v882
        %v983 = vpop.f32.mrf.mxu0
        %v984 = vadd.f32 0.0, %v983
        %v985 = vpop.f32.mrf.mxu0
        %986 = vdwg.mxu0
        %v987 = vld [vmem:[#allocation18] sm:$0xff]
        %v988 = vld [vmem:[#allocation18 + $0x8] sm:$0xff]
        %v989 = vld [vmem:[#allocation18 + $0x10] sm:$0xff]
        %v990 = vld [vmem:[#allocation18 + $0x18] sm:$0xff]
        %v991 = vld [vmem:[#allocation18 + $0x20] sm:$0xff]
        %v992 = vld [vmem:[#allocation18 + $0x28] sm:$0xff]
        %v993 = vld [vmem:[#allocation18 + $0x30] sm:$0xff]
        %v994 = vld [vmem:[#allocation18 + $0x38] sm:$0xff]
        %v995 = vld [vmem:[#allocation18 + $0x40] sm:$0xff]
        %v996 = vld [vmem:[#allocation18 + $0x48] sm:$0xff]
        %v997 = vld [vmem:[#allocation18 + $0x50] sm:$0xff]
        %v998 = vld [vmem:[#allocation18 + $0x58] sm:$0xff]
        %v999 = vld [vmem:[#allocation18 + $0x60] sm:$0xff]
        %v1000 = vld [vmem:[#allocation18 + $0x68] sm:$0xff]
        %v1001 = vld [vmem:[#allocation18 + $0x70] sm:$0xff]
        %v1002 = vld [vmem:[#allocation18 + $0x78] sm:$0xff]
        %v1003 = vld [vmem:[#allocation18 + $0x80] sm:$0xff]
        %v1004 = vld [vmem:[#allocation18 + $0x88] sm:$0xff]
        %v1005 = vld [vmem:[#allocation18 + $0x90] sm:$0xff]
        %v1006 = vld [vmem:[#allocation18 + $0x98] sm:$0xff]
        %v1007 = vld [vmem:[#allocation18 + $0xa0] sm:$0xff]
        %v1008 = vld [vmem:[#allocation18 + $0xa8] sm:$0xff]
        %v1009 = vld [vmem:[#allocation18 + $0xb0] sm:$0xff]
        %v1010 = vld [vmem:[#allocation18 + $0xb8] sm:$0xff]
        %v1011 = vld [vmem:[#allocation18 + $0xc0] sm:$0xff]
        %v1012 = vld [vmem:[#allocation18 + $0xc8] sm:$0xff]
        %v1013 = vld [vmem:[#allocation18 + $0xd0] sm:$0xff]
        %v1014 = vld [vmem:[#allocation18 + $0xd8] sm:$0xff]
        %v1015 = vld [vmem:[#allocation18 + $0xe0] sm:$0xff]
        %v1016 = vld [vmem:[#allocation18 + $0xe8] sm:$0xff]
        %v1017 = vld [vmem:[#allocation18 + $0xf0] sm:$0xff]
        %v1018 = vld [vmem:[#allocation18 + $0xf8] sm:$0xff]
        %v1019 = vld [vmem:[#allocation18 + $0x100] sm:$0xff]
        %v1020 = vld [vmem:[#allocation18 + $0x108] sm:$0xff]
        %v1021 = vld [vmem:[#allocation18 + $0x110] sm:$0xff]
        %v1022 = vld [vmem:[#allocation18 + $0x118] sm:$0xff]
        %v1023 = vld [vmem:[#allocation18 + $0x120] sm:$0xff]
        %v1024 = vld [vmem:[#allocation18 + $0x128] sm:$0xff]
        %v1025 = vld [vmem:[#allocation18 + $0x130] sm:$0xff]
        %v1026 = vld [vmem:[#allocation18 + $0x138] sm:$0xff]
        %v1027 = vld [vmem:[#allocation18 + $0x140] sm:$0xff]
        %v1028 = vld [vmem:[#allocation18 + $0x148] sm:$0xff]
        %v1029 = vld [vmem:[#allocation18 + $0x150] sm:$0xff]
        %v1030 = vld [vmem:[#allocation18 + $0x158] sm:$0xff]
        %v1031 = vld [vmem:[#allocation18 + $0x160] sm:$0xff]
        %v1032 = vld [vmem:[#allocation18 + $0x168] sm:$0xff]
        %v1033 = vld [vmem:[#allocation18 + $0x170] sm:$0xff]
        %v1034 = vld [vmem:[#allocation18 + $0x178] sm:$0xff]
        %v1035 = vld [vmem:[#allocation18 + $0x180] sm:$0xff]
        %v1036 = vld [vmem:[#allocation18 + $0x188] sm:$0xff]
        %v1037 = vld [vmem:[#allocation18 + $0x190] sm:$0xff]
        %v1038 = vld [vmem:[#allocation18 + $0x198] sm:$0xff]
        %v1039 = vld [vmem:[#allocation18 + $0x1a0] sm:$0xff]
        %v1040 = vld [vmem:[#allocation18 + $0x1a8] sm:$0xff]
        %v1041 = vld [vmem:[#allocation18 + $0x1b0] sm:$0xff]
        %v1042 = vld [vmem:[#allocation18 + $0x1b8] sm:$0xff]
        %v1043 = vld [vmem:[#allocation18 + $0x1c0] sm:$0xff]
        %v1044 = vld [vmem:[#allocation18 + $0x1c8] sm:$0xff]
        %v1045 = vld [vmem:[#allocation18 + $0x1d0] sm:$0xff]
        %v1046 = vld [vmem:[#allocation18 + $0x1d8] sm:$0xff]
        %v1047 = vld [vmem:[#allocation18 + $0x1e0] sm:$0xff]
        %v1048 = vld [vmem:[#allocation18 + $0x1e8] sm:$0xff]
        %v1049 = vld [vmem:[#allocation18 + $0x1f0] sm:$0xff]
        %v1050 = vld [vmem:[#allocation18 + $0x1f8] sm:$0xff]
        %1051 = vmatprep.subr.mxu0 %v1018
        %1052 = vmatpush1.msra.mxu0 %v1017
        %1053 = vmatprep.subr.mxu0 %v1016
        %1054 = vmatpush1.msra.mxu0 %v1015
        %1055 = vmatprep.subr.mxu0 %v1014
        %1056 = vmatpush1.msra.mxu0 %v1013
        %1057 = vmatprep.subr.mxu0 %v1012
        %1058 = vmatpush1.msra.mxu0 %v1011
        %1059 = vmatprep.subr.mxu0 %v1010
        %1060 = vmatpush1.msra.mxu0 %v1009
        %1061 = vmatprep.subr.mxu0 %v1008
        %1062 = vmatpush1.msra.mxu0 %v1007
        %1063 = vmatprep.subr.mxu0 %v1006
        %1064 = vmatpush1.msra.mxu0 %v1005
        %1065 = vmatprep.subr.mxu0 %v1004
        %1066 = vmatpush1.msra.mxu0 %v1003
        %1067 = vmatprep.subr.mxu0 %v1002
        %1068 = vmatpush1.msra.mxu0 %v1001
        %1069 = vmatprep.subr.mxu0 %v1000
        %1070 = vmatpush1.msra.mxu0 %v999
        %1071 = vmatprep.subr.mxu0 %v998
        %1072 = vmatpush1.msra.mxu0 %v997
        %1073 = vmatprep.subr.mxu0 %v996
        %1074 = vmatpush1.msra.mxu0 %v995
        %1075 = vmatprep.subr.mxu0 %v994
        %1076 = vmatpush1.msra.mxu0 %v993
        %1077 = vmatprep.subr.mxu0 %v992
        %1078 = vmatpush1.msra.mxu0 %v991
        %1079 = vmatprep.subr.mxu0 %v990
        %1080 = vmatpush1.msra.mxu0 %v989
        %1081 = vmatprep.subr.mxu0 %v988
        %1082 = vmatpush1.msra.mxu0 %v987
        %1083 = vmatprep.subr.mxu0 %v1050
        %1084 = vmatpush2.msra.mxu0 %v1049
        %1085 = vmatprep.subr.mxu0 %v1048
        %1086 = vmatpush2.msra.mxu0 %v1047
        %1087 = vmatprep.subr.mxu0 %v1046
        %1088 = vmatpush2.msra.mxu0 %v1045
        %1089 = vmatprep.subr.mxu0 %v1044
        %1090 = vmatpush2.msra.mxu0 %v1043
        %1091 = vmatprep.subr.mxu0 %v1042
        %1092 = vmatpush2.msra.mxu0 %v1041
        %1093 = vmatprep.subr.mxu0 %v1040
        %1094 = vmatpush2.msra.mxu0 %v1039
        %1095 = vmatprep.subr.mxu0 %v1038
        %1096 = vmatpush2.msra.mxu0 %v1037
        %1097 = vmatprep.subr.mxu0 %v1036
        %1098 = vmatpush2.msra.mxu0 %v1035
        %1099 = vmatprep.subr.mxu0 %v1034
        %1100 = vmatpush2.msra.mxu0 %v1033
        %1101 = vmatprep.subr.mxu0 %v1032
        %1102 = vmatpush2.msra.mxu0 %v1031
        %1103 = vmatprep.subr.mxu0 %v1030
        %1104 = vmatpush2.msra.mxu0 %v1029
        %1105 = vmatprep.subr.mxu0 %v1028
        %1106 = vmatpush2.msra.mxu0 %v1027
        %1107 = vmatprep.subr.mxu0 %v1026
        %1108 = vmatpush2.msra.mxu0 %v1025
        %1109 = vmatprep.subr.mxu0 %v1024
        %1110 = vmatpush2.msra.mxu0 %v1023
        %1111 = vmatprep.subr.mxu0 %v1022
        %1112 = vmatpush2.msra.mxu0 %v1021
        %1113 = vmatprep.subr.mxu0 %v1020
        %1114 = vmatpush2.msra.mxu0 %v1019
        %1115 = vmatprep.mubr.f32.mxu0 %v883
        %1116 = vmatmul.mubr.f32.gmra.mxu0 %v882
        %v1117 = vpop.f32.mrf.mxu0
        %v1118 = vadd.f32 0.0, %v1117
        %v1119 = vpop.f32.mrf.mxu0
        %v1120 = vadd.f32 0.0, %v1119
        %1121 = vdwg.mxu0
        %vm1122 = vcmp.ge.f32.partialorder %v1118, 0.5
        %vm1123 = vcmp.ge.f32.partialorder %v1120, 0.5
        %v1124 = vsel %vm1122, 1e-05, 1.0
        %v1125 = vsel %vm1123, 1e-05, 1.0
        %v1126 = vld [vmem:[%s4] sm:$0xff]
        %v1127 = vld [vmem:[%s4 + $0x8] sm:$0xff]
        %v1128 = vld [vmem:[%s4 + $0x10] sm:$0xff]
        %v1129 = vld [vmem:[%s4 + $0x18] sm:$0xff]
        %v1130 = vld [vmem:[%s4 + $0x20] sm:$0xff]
        %v1131 = vld [vmem:[%s4 + $0x28] sm:$0xff]
        %v1132 = vld [vmem:[%s4 + $0x30] sm:$0xff]
        %v1133 = vld [vmem:[%s4 + $0x38] sm:$0xff]
        %v1134 = vld [vmem:[#allocation6] sm:$0x1]
        %v1136 = vlaneseq
        %v1137 = vshrl.u32 %v1136, 7
        %v1138 = vsub.s32 0, %v1137
        %v1139 = vrot.slane %v1134, %v1138
        %vm1141 = vcmask 523264
        %v1143 = vsel %vm1141, %v984, 0
        %1145 = vmatprep.subr.mxu0 0.0
        %1146 = vmatpush1.msra.mxu0 0.0
        %1147 = vmatprep.subr.mxu0 0.0
        %1148 = vmatpush1.msra.mxu0 0.0
        %1149 = vmatprep.subr.mxu0 0.0
        %1150 = vmatpush1.msra.mxu0 0.0
        %1151 = vmatprep.subr.mxu0 0.0
        %1152 = vmatpush1.msra.mxu0 0.0
        %1153 = vmatprep.subr.mxu0 0.0
        %1154 = vmatpush1.msra.mxu0 0.0
        %1155 = vmatprep.subr.mxu0 0.0
        %1156 = vmatpush1.msra.mxu0 0.0
        %1157 = vmatprep.subr.mxu0 0.0
        %1158 = vmatpush1.msra.mxu0 0.0
        %1159 = vmatprep.subr.mxu0 0.0
        %1160 = vmatpush1.msra.mxu0 0.0
        %1161 = vmatprep.subr.mxu0 0.0
        %1162 = vmatpush1.msra.mxu0 %v1133
        %1163 = vmatprep.subr.mxu0 0.0
        %1164 = vmatpush1.msra.mxu0 %v1132
        %1165 = vmatprep.subr.mxu0 0.0
        %1166 = vmatpush1.msra.mxu0 %v1131
        %1167 = vmatprep.subr.mxu0 0.0
        %1168 = vmatpush1.msra.mxu0 %v1130
        %1169 = vmatprep.subr.mxu0 0.0
        %1170 = vmatpush1.msra.mxu0 %v1129
        %1171 = vmatprep.subr.mxu0 0.0
        %1172 = vmatpush1.msra.mxu0 %v1128
        %1173 = vmatprep.subr.mxu0 0.0
        %1174 = vmatpush1.msra.mxu0 %v1127
        %1175 = vmatprep.subr.mxu0 0.0
        %1176 = vmatpush1.msra.mxu0 %v1126
        %1177 = vmatprep.subr.mxu0 0.0
        %1178 = vmatpush2.msra.mxu0 0.0
        %1179 = vmatprep.subr.mxu0 0.0
        %1180 = vmatpush2.msra.mxu0 0.0
        %1181 = vmatprep.subr.mxu0 0.0
        %1182 = vmatpush2.msra.mxu0 0.0
        %1183 = vmatprep.subr.mxu0 0.0
        %1184 = vmatpush2.msra.mxu0 0.0
        %1185 = vmatprep.subr.mxu0 0.0
        %1186 = vmatpush2.msra.mxu0 0.0
        %1187 = vmatprep.subr.mxu0 0.0
        %1188 = vmatpush2.msra.mxu0 0.0
        %1189 = vmatprep.subr.mxu0 0.0
        %1190 = vmatpush2.msra.mxu0 0.0
        %1191 = vmatprep.subr.mxu0 0.0
        %1192 = vmatpush2.msra.mxu0 0.0
        %1193 = vmatprep.subr.mxu0 0.0
        %1194 = vmatpush2.msra.mxu0 0.0
        %1195 = vmatprep.subr.mxu0 0.0
        %1196 = vmatpush2.msra.mxu0 0.0
        %1197 = vmatprep.subr.mxu0 0.0
        %1198 = vmatpush2.msra.mxu0 0.0
        %1199 = vmatprep.subr.mxu0 0.0
        %1200 = vmatpush2.msra.mxu0 0.0
        %1201 = vmatprep.subr.mxu0 0.0
        %1202 = vmatpush2.msra.mxu0 0.0
        %1203 = vmatprep.subr.mxu0 0.0
        %1204 = vmatpush2.msra.mxu0 0.0
        %1205 = vmatprep.subr.mxu0 0.0
        %1206 = vmatpush2.msra.mxu0 0.0
        %1207 = vmatprep.subr.mxu0 0.0
        %1208 = vmatpush2.msra.mxu0 0.0
        %1209 = vmatprep.mubr.f32.mxu0 0.0
        %1210 = vmatmul.mubr.f32.gmra.mxu0 %v1143
        %v1211 = vpop.f32.mrf.mxu0
        %v1212 = vadd.f32 %v1139, %v1211
        %v1213 = vpop.f32.mrf.mxu0
        %1214 = vdwg.mxu0
        %v1215 = vld [vmem:[%s6] sm:$0xff]
        %v1216 = vld [vmem:[%s6 + $0x8] sm:$0xff]
        %v1217 = vld [vmem:[%s6 + $0x10] sm:$0xff]
        %v1218 = vld [vmem:[%s6 + $0x18] sm:$0xff]
        %v1219 = vld [vmem:[%s6 + $0x20] sm:$0xff]
        %v1220 = vld [vmem:[%s6 + $0x28] sm:$0xff]
        %v1221 = vld [vmem:[%s6 + $0x30] sm:$0xff]
        %v1222 = vld [vmem:[%s6 + $0x38] sm:$0xff]
        %v1223 = vld [vmem:[%s7] sm:$0xff]
        %v1224 = vld [vmem:[%s7 + $0x8] sm:$0xff]
        %v1225 = vld [vmem:[%s7 + $0x10] sm:$0xff]
        %v1226 = vld [vmem:[%s7 + $0x18] sm:$0xff]
        %v1227 = vld [vmem:[%s7 + $0x20] sm:$0xff]
        %v1228 = vld [vmem:[%s7 + $0x28] sm:$0xff]
        %v1229 = vld [vmem:[%s7 + $0x30] sm:$0xff]
        %v1230 = vld [vmem:[%s7 + $0x38] sm:$0xff]
        %v1232 = vsel %vm1141, %v884, 0
        %1234 = vmatprep.subr.mxu0 0.0
        %1235 = vmatpush1.msra.mxu0 0.0
        %1236 = vmatprep.subr.mxu0 0.0
        %1237 = vmatpush1.msra.mxu0 0.0
        %1238 = vmatprep.subr.mxu0 0.0
        %1239 = vmatpush1.msra.mxu0 0.0
        %1240 = vmatprep.subr.mxu0 0.0
        %1241 = vmatpush1.msra.mxu0 0.0
        %1242 = vmatprep.subr.mxu0 0.0
        %1243 = vmatpush1.msra.mxu0 0.0
        %1244 = vmatprep.subr.mxu0 0.0
        %1245 = vmatpush1.msra.mxu0 0.0
        %1246 = vmatprep.subr.mxu0 0.0
        %1247 = vmatpush1.msra.mxu0 0.0
        %1248 = vmatprep.subr.mxu0 0.0
        %1249 = vmatpush1.msra.mxu0 0.0
        %1250 = vmatprep.subr.mxu0 0.0
        %1251 = vmatpush1.msra.mxu0 %v1230
        %1252 = vmatprep.subr.mxu0 0.0
        %1253 = vmatpush1.msra.mxu0 %v1229
        %1254 = vmatprep.subr.mxu0 0.0
        %1255 = vmatpush1.msra.mxu0 %v1228
        %1256 = vmatprep.subr.mxu0 0.0
        %1257 = vmatpush1.msra.mxu0 %v1227
        %1258 = vmatprep.subr.mxu0 0.0
        %1259 = vmatpush1.msra.mxu0 %v1226
        %1260 = vmatprep.subr.mxu0 0.0
        %1261 = vmatpush1.msra.mxu0 %v1225
        %1262 = vmatprep.subr.mxu0 0.0
        %1263 = vmatpush1.msra.mxu0 %v1224
        %1264 = vmatprep.subr.mxu0 0.0
        %1265 = vmatpush1.msra.mxu0 %v1223
        %1266 = vmatprep.subr.mxu0 0.0
        %1267 = vmatpush2.msra.mxu0 0.0
        %1268 = vmatprep.subr.mxu0 0.0
        %1269 = vmatpush2.msra.mxu0 0.0
        %1270 = vmatprep.subr.mxu0 0.0
        %1271 = vmatpush2.msra.mxu0 0.0
        %1272 = vmatprep.subr.mxu0 0.0
        %1273 = vmatpush2.msra.mxu0 0.0
        %1274 = vmatprep.subr.mxu0 0.0
        %1275 = vmatpush2.msra.mxu0 0.0
        %1276 = vmatprep.subr.mxu0 0.0
        %1277 = vmatpush2.msra.mxu0 0.0
        %1278 = vmatprep.subr.mxu0 0.0
        %1279 = vmatpush2.msra.mxu0 0.0
        %1280 = vmatprep.subr.mxu0 0.0
        %1281 = vmatpush2.msra.mxu0 0.0
        %1282 = vmatprep.subr.mxu0 0.0
        %1283 = vmatpush2.msra.mxu0 0.0
        %1284 = vmatprep.subr.mxu0 0.0
        %1285 = vmatpush2.msra.mxu0 0.0
        %1286 = vmatprep.subr.mxu0 0.0
        %1287 = vmatpush2.msra.mxu0 0.0
        %1288 = vmatprep.subr.mxu0 0.0
        %1289 = vmatpush2.msra.mxu0 0.0
        %1290 = vmatprep.subr.mxu0 0.0
        %1291 = vmatpush2.msra.mxu0 0.0
        %1292 = vmatprep.subr.mxu0 0.0
        %1293 = vmatpush2.msra.mxu0 0.0
        %1294 = vmatprep.subr.mxu0 0.0
        %1295 = vmatpush2.msra.mxu0 0.0
        %1296 = vmatprep.subr.mxu0 0.0
        %1297 = vmatpush2.msra.mxu0 0.0
        %1298 = vmatprep.mubr.f32.mxu0 0.0
        %1299 = vmatmul.mubr.f32.gmra.mxu0 %v1232
        %v1300 = vpop.f32.mrf.mxu0
        %v1301 = vadd.f32 0.0, %v1300
        %v1302 = vpop.f32.mrf.mxu0
        %1303 = vdwg.mxu0
        %v1305 = vsel %vm1141, %v1212, 0
        %1307 = vmatprep.subr.mxu0 0.0
        %1308 = vmatpush1.msra.mxu0 0.0
        %1309 = vmatprep.subr.mxu0 0.0
        %1310 = vmatpush1.msra.mxu0 0.0
        %1311 = vmatprep.subr.mxu0 0.0
        %1312 = vmatpush1.msra.mxu0 0.0
        %1313 = vmatprep.subr.mxu0 0.0
        %1314 = vmatpush1.msra.mxu0 0.0
        %1315 = vmatprep.subr.mxu0 0.0
        %1316 = vmatpush1.msra.mxu0 0.0
        %1317 = vmatprep.subr.mxu0 0.0
        %1318 = vmatpush1.msra.mxu0 0.0
        %1319 = vmatprep.subr.mxu0 0.0
        %1320 = vmatpush1.msra.mxu0 0.0
        %1321 = vmatprep.subr.mxu0 0.0
        %1322 = vmatpush1.msra.mxu0 0.0
        %1323 = vmatprep.subr.mxu0 0.0
        %1324 = vmatpush1.msra.mxu0 %v1222
        %1325 = vmatprep.subr.mxu0 0.0
        %1326 = vmatpush1.msra.mxu0 %v1221
        %1327 = vmatprep.subr.mxu0 0.0
        %1328 = vmatpush1.msra.mxu0 %v1220
        %1329 = vmatprep.subr.mxu0 0.0
        %1330 = vmatpush1.msra.mxu0 %v1219
        %1331 = vmatprep.subr.mxu0 0.0
        %1332 = vmatpush1.msra.mxu0 %v1218
        %1333 = vmatprep.subr.mxu0 0.0
        %1334 = vmatpush1.msra.mxu0 %v1217
        %1335 = vmatprep.subr.mxu0 0.0
        %1336 = vmatpush1.msra.mxu0 %v1216
        %1337 = vmatprep.subr.mxu0 0.0
        %1338 = vmatpush1.msra.mxu0 %v1215
        %1339 = vmatprep.subr.mxu0 0.0
        %1340 = vmatpush2.msra.mxu0 0.0
        %1341 = vmatprep.subr.mxu0 0.0
        %1342 = vmatpush2.msra.mxu0 0.0
        %1343 = vmatprep.subr.mxu0 0.0
        %1344 = vmatpush2.msra.mxu0 0.0
        %1345 = vmatprep.subr.mxu0 0.0
        %1346 = vmatpush2.msra.mxu0 0.0
        %1347 = vmatprep.subr.mxu0 0.0
        %1348 = vmatpush2.msra.mxu0 0.0
        %1349 = vmatprep.subr.mxu0 0.0
        %1350 = vmatpush2.msra.mxu0 0.0
        %1351 = vmatprep.subr.mxu0 0.0
        %1352 = vmatpush2.msra.mxu0 0.0
        %1353 = vmatprep.subr.mxu0 0.0
        %1354 = vmatpush2.msra.mxu0 0.0
        %1355 = vmatprep.subr.mxu0 0.0
        %1356 = vmatpush2.msra.mxu0 0.0
        %1357 = vmatprep.subr.mxu0 0.0
        %1358 = vmatpush2.msra.mxu0 0.0
        %1359 = vmatprep.subr.mxu0 0.0
        %1360 = vmatpush2.msra.mxu0 0.0
        %1361 = vmatprep.subr.mxu0 0.0
        %1362 = vmatpush2.msra.mxu0 0.0
        %1363 = vmatprep.subr.mxu0 0.0
        %1364 = vmatpush2.msra.mxu0 0.0
        %1365 = vmatprep.subr.mxu0 0.0
        %1366 = vmatpush2.msra.mxu0 0.0
        %1367 = vmatprep.subr.mxu0 0.0
        %1368 = vmatpush2.msra.mxu0 0.0
        %1369 = vmatprep.subr.mxu0 0.0
        %1370 = vmatpush2.msra.mxu0 0.0
        %1371 = vmatprep.mubr.f32.mxu0 0.0
        %1372 = vmatmul.mubr.f32.gmra.mxu0 %v1305
        %v1373 = vpop.f32.mrf.mxu0
        %v1374 = vadd.f32 %v1301, %v1373
        %v1375 = vpop.f32.mrf.mxu0
        %1376 = vdwg.mxu0
        %v1377 = vld [vmem:[#allocation8] sm:$0x1]
        %v1379 = vlaneseq
        %v1380 = vshrl.u32 %v1379, 7
        %v1381 = vsub.s32 0, %v1380
        %v1382 = vrot.slane %v1377, %v1381
        %v1384 = vadd.f32 %v1374, %v1382
        %v1385 = vmax.f32 %v1384, 0.0
        %v1386 = vld [vmem:[%s9] sm:$0xff]
        %v1387 = vld [vmem:[%s9 + $0x8] sm:$0xff]
        %v1388 = vld [vmem:[%s9 + $0x10] sm:$0xff]
        %v1389 = vld [vmem:[%s9 + $0x18] sm:$0xff]
        %v1390 = vld [vmem:[%s9 + $0x20] sm:$0xff]
        %v1391 = vld [vmem:[%s9 + $0x28] sm:$0xff]
        %v1392 = vld [vmem:[%s9 + $0x30] sm:$0xff]
        %v1393 = vld [vmem:[%s9 + $0x38] sm:$0xff]
        %v1394 = vld [vmem:[#allocation9] sm:$0x1]
        %v1396 = vlaneseq
        %v1397 = vshrl.u32 %v1396, 7
        %v1398 = vsub.s32 0, %v1397
        %v1399 = vrot.slane %v1394, %v1398
        %v1402 = vsel %vm1141, %v1385, 0
        %1404 = vmatprep.subr.mxu0 0.0
        %1405 = vmatpush1.msra.mxu0 0.0
        %1406 = vmatprep.subr.mxu0 0.0
        %1407 = vmatpush1.msra.mxu0 0.0
        %1408 = vmatprep.subr.mxu0 0.0
        %1409 = vmatpush1.msra.mxu0 0.0
        %1410 = vmatprep.subr.mxu0 0.0
        %1411 = vmatpush1.msra.mxu0 0.0
        %1412 = vmatprep.subr.mxu0 0.0
        %1413 = vmatpush1.msra.mxu0 0.0
        %1414 = vmatprep.subr.mxu0 0.0
        %1415 = vmatpush1.msra.mxu0 0.0
        %1416 = vmatprep.subr.mxu0 0.0
        %1417 = vmatpush1.msra.mxu0 0.0
        %1418 = vmatprep.subr.mxu0 0.0
        %1419 = vmatpush1.msra.mxu0 0.0
        %1420 = vmatprep.subr.mxu0 0.0
        %1421 = vmatpush1.msra.mxu0 %v1393
        %1422 = vmatprep.subr.mxu0 0.0
        %1423 = vmatpush1.msra.mxu0 %v1392
        %1424 = vmatprep.subr.mxu0 0.0
        %1425 = vmatpush1.msra.mxu0 %v1391
        %1426 = vmatprep.subr.mxu0 0.0
        %1427 = vmatpush1.msra.mxu0 %v1390
        %1428 = vmatprep.subr.mxu0 0.0
        %1429 = vmatpush1.msra.mxu0 %v1389
        %1430 = vmatprep.subr.mxu0 0.0
        %1431 = vmatpush1.msra.mxu0 %v1388
        %1432 = vmatprep.subr.mxu0 0.0
        %1433 = vmatpush1.msra.mxu0 %v1387
        %1434 = vmatprep.subr.mxu0 0.0
        %1435 = vmatpush1.msra.mxu0 %v1386
        %1436 = vmatprep.subr.mxu0 0.0
        %1437 = vmatpush2.msra.mxu0 0.0
        %1438 = vmatprep.subr.mxu0 0.0
        %1439 = vmatpush2.msra.mxu0 0.0
        %1440 = vmatprep.subr.mxu0 0.0
        %1441 = vmatpush2.msra.mxu0 0.0
        %1442 = vmatprep.subr.mxu0 0.0
        %1443 = vmatpush2.msra.mxu0 0.0
        %1444 = vmatprep.subr.mxu0 0.0
        %1445 = vmatpush2.msra.mxu0 0.0
        %1446 = vmatprep.subr.mxu0 0.0
        %1447 = vmatpush2.msra.mxu0 0.0
        %1448 = vmatprep.subr.mxu0 0.0
        %1449 = vmatpush2.msra.mxu0 0.0
        %1450 = vmatprep.subr.mxu0 0.0
        %1451 = vmatpush2.msra.mxu0 0.0
        %1452 = vmatprep.subr.mxu0 0.0
        %1453 = vmatpush2.msra.mxu0 0.0
        %1454 = vmatprep.subr.mxu0 0.0
        %1455 = vmatpush2.msra.mxu0 0.0
        %1456 = vmatprep.subr.mxu0 0.0
        %1457 = vmatpush2.msra.mxu0 0.0
        %1458 = vmatprep.subr.mxu0 0.0
        %1459 = vmatpush2.msra.mxu0 0.0
        %1460 = vmatprep.subr.mxu0 0.0
        %1461 = vmatpush2.msra.mxu0 0.0
        %1462 = vmatprep.subr.mxu0 0.0
        %1463 = vmatpush2.msra.mxu0 0.0
        %1464 = vmatprep.subr.mxu0 0.0
        %1465 = vmatpush2.msra.mxu0 0.0
        %1466 = vmatprep.subr.mxu0 0.0
        %1467 = vmatpush2.msra.mxu0 0.0
        %1468 = vmatprep.mubr.f32.mxu0 0.0
        %1469 = vmatmul.mubr.f32.gmra.mxu0 %v1402
        %v1470 = vpop.f32.mrf.mxu0
        %v1471 = vadd.f32 %v1399, %v1470
        %v1472 = vpop.f32.mrf.mxu0
        %1473 = vdwg.mxu0
        %vm1474 = vcmask 130048
        %v1475 = vsel %vm1474, %v1471, -inf
        %1476 = vmax.xlane.f32.xlu0 %v1475
        %v1477 = vpop.xlane.xlu0 %1476
        %v1478 = vlaneseq
        %v1479 = vand.u32 %v1478, 127
        %vm1480 = vcmp.eq.f32.partialorder %v1471, %v1477
        %v1481 = vsel %vm1480, %v1479, 16
        %v1482 = vsel %vm1474, %v1481, 2147483647
        %v1483 = vand.u32 %v1482, 65535
        %v1484 = vshra.s32 %v1482, 16
        %v1485 = vcvt.s32.f32 %v1483
        %v1486 = vcvt.s32.f32 %v1484
        %1487 = vmin.xlane.f32.xlu0 %v1486
        %v1488 = vpop.xlane.xlu0 %1487
        %vm1489 = vcmp.eq.f32.partialorder %v1486, %v1488
        %v1490 = vsel %vm1489, %v1485, inf
        %1491 = vmin.xlane.f32.xlu0 %v1490
        %v1492 = vpop.xlane.xlu0 %1491
        %v1493 = vcvt.f32.s32 %v1492
        %v1494 = vcvt.f32.s32 %v1488
        %v1495 = vshll.u32 %v1494, 16
        %v1496 = vadd.s32 %v1495, %v1493
        %vm1497 = vcmp.eq.s32.totalorder %v1479, %v1496
        %v1498 = vsel %vm1497, 1, 0
        %v1499 = vcvt.s32.f32 %v1498
        %v1500 = vld [vmem:[#allocation11] sm:$0xff]
        %v1501 = vld [vmem:[#allocation11 + $0x8] sm:$0xff]
        %v1503 = vsel %vm1474, %v1499, 0
        %1505 = vmatprep.subr.mxu0 0.0
        %1506 = vmatpush1.msra.mxu0 0.0
        %1507 = vmatprep.subr.mxu0 0.0
        %1508 = vmatpush1.msra.mxu0 0.0
        %1509 = vmatprep.subr.mxu0 0.0
        %1510 = vmatpush1.msra.mxu0 0.0
        %1511 = vmatprep.subr.mxu0 0.0
        %1512 = vmatpush1.msra.mxu0 0.0
        %1513 = vmatprep.subr.mxu0 0.0
        %1514 = vmatpush1.msra.mxu0 0.0
        %1515 = vmatprep.subr.mxu0 0.0
        %1516 = vmatpush1.msra.mxu0 0.0
        %1517 = vmatprep.subr.mxu0 0.0
        %1518 = vmatpush1.msra.mxu0 0.0
        %1519 = vmatprep.subr.mxu0 0.0
        %1520 = vmatpush1.msra.mxu0 0.0
        %1521 = vmatprep.subr.mxu0 0.0
        %1522 = vmatpush1.msra.mxu0 0.0
        %1523 = vmatprep.subr.mxu0 0.0
        %1524 = vmatpush1.msra.mxu0 0.0
        %1525 = vmatprep.subr.mxu0 0.0
        %1526 = vmatpush1.msra.mxu0 0.0
        %1527 = vmatprep.subr.mxu0 0.0
        %1528 = vmatpush1.msra.mxu0 0.0
        %1529 = vmatprep.subr.mxu0 0.0
        %1530 = vmatpush1.msra.mxu0 0.0
        %1531 = vmatprep.subr.mxu0 0.0
        %1532 = vmatpush1.msra.mxu0 0.0
        %1533 = vmatprep.subr.mxu0 0.0
        %1534 = vmatpush1.msra.mxu0 %v1501
        %1535 = vmatprep.subr.mxu0 0.0
        %1536 = vmatpush1.msra.mxu0 %v1500
        %1537 = vmatprep.subr.mxu0 0.0
        %1538 = vmatpush2.msra.mxu0 0.0
        %1539 = vmatprep.subr.mxu0 0.0
        %1540 = vmatpush2.msra.mxu0 0.0
        %1541 = vmatprep.subr.mxu0 0.0
        %1542 = vmatpush2.msra.mxu0 0.0
        %1543 = vmatprep.subr.mxu0 0.0
        %1544 = vmatpush2.msra.mxu0 0.0
        %1545 = vmatprep.subr.mxu0 0.0
        %1546 = vmatpush2.msra.mxu0 0.0
        %1547 = vmatprep.subr.mxu0 0.0
        %1548 = vmatpush2.msra.mxu0 0.0
        %1549 = vmatprep.subr.mxu0 0.0
        %1550 = vmatpush2.msra.mxu0 0.0
        %1551 = vmatprep.subr.mxu0 0.0
        %1552 = vmatpush2.msra.mxu0 0.0
        %1553 = vmatprep.subr.mxu0 0.0
        %1554 = vmatpush2.msra.mxu0 0.0
        %1555 = vmatprep.subr.mxu0 0.0
        %1556 = vmatpush2.msra.mxu0 0.0
        %1557 = vmatprep.subr.mxu0 0.0
        %1558 = vmatpush2.msra.mxu0 0.0
        %1559 = vmatprep.subr.mxu0 0.0
        %1560 = vmatpush2.msra.mxu0 0.0
        %1561 = vmatprep.subr.mxu0 0.0
        %1562 = vmatpush2.msra.mxu0 0.0
        %1563 = vmatprep.subr.mxu0 0.0
        %1564 = vmatpush2.msra.mxu0 0.0
        %1565 = vmatprep.subr.mxu0 0.0
        %1566 = vmatpush2.msra.mxu0 0.0
        %1567 = vmatprep.subr.mxu0 0.0
        %1568 = vmatpush2.msra.mxu0 0.0
        %1569 = vmatprep.mubr.f32.mxu0 0.0
        %1570 = vmatmul.mubr.f32.gmra.mxu0 %v1503
        %v1571 = vpop.f32.mrf.mxu0
        %v1572 = vadd.f32 0.0, %v1571
        %v1573 = vpop.f32.mrf.mxu0
        %1574 = vdwg.mxu0
        %1575 = vst.msk [vmem:[%s781] sm:$0xff] %vm1141, %v1572
        %v1576 = vld [vmem:[#allocation12] sm:$0xff]
        %v1577 = vld [vmem:[#allocation12 + $0x8] sm:$0xff]
        %v1578 = vld [vmem:[#allocation12 + $0x10] sm:$0xff]
        %v1579 = vld [vmem:[#allocation12 + $0x18] sm:$0xff]
        %v1580 = vld [vmem:[#allocation12 + $0x20] sm:$0xff]
        %v1581 = vld [vmem:[#allocation12 + $0x28] sm:$0xff]
        %v1582 = vld [vmem:[#allocation12 + $0x30] sm:$0xff]
        %v1583 = vld [vmem:[#allocation12 + $0x38] sm:$0xff]
        %v1584 = vld [vmem:[#allocation14] sm:$0xff]
        %v1585 = vld [vmem:[#allocation14 + $0x8] sm:$0xff]
        %v1586 = vld [vmem:[#allocation14 + $0x10] sm:$0xff]
        %v1587 = vld [vmem:[#allocation14 + $0x18] sm:$0xff]
        %v1588 = vld [vmem:[#allocation14 + $0x20] sm:$0xff]
        %v1589 = vld [vmem:[#allocation14 + $0x28] sm:$0xff]
        %v1590 = vld [vmem:[#allocation14 + $0x30] sm:$0xff]
        %v1591 = vld [vmem:[#allocation14 + $0x38] sm:$0xff]
        %1592 = vmatprep.subr.mxu0 0.0
        %1593 = vmatpush1.msra.mxu0 0.0
        %1594 = vmatprep.subr.mxu0 0.0
        %1595 = vmatpush1.msra.mxu0 0.0
        %1596 = vmatprep.subr.mxu0 0.0
        %1597 = vmatpush1.msra.mxu0 0.0
        %1598 = vmatprep.subr.mxu0 0.0
        %1599 = vmatpush1.msra.mxu0 0.0
        %1600 = vmatprep.subr.mxu0 0.0
        %1601 = vmatpush1.msra.mxu0 0.0
        %1602 = vmatprep.subr.mxu0 0.0
        %1603 = vmatpush1.msra.mxu0 0.0
        %1604 = vmatprep.subr.mxu0 0.0
        %1605 = vmatpush1.msra.mxu0 0.0
        %1606 = vmatprep.subr.mxu0 0.0
        %1607 = vmatpush1.msra.mxu0 0.0
        %1608 = vmatprep.subr.mxu0 0.0
        %1609 = vmatpush1.msra.mxu0 %v1591
        %1610 = vmatprep.subr.mxu0 0.0
        %1611 = vmatpush1.msra.mxu0 %v1590
        %1612 = vmatprep.subr.mxu0 0.0
        %1613 = vmatpush1.msra.mxu0 %v1589
        %1614 = vmatprep.subr.mxu0 0.0
        %1615 = vmatpush1.msra.mxu0 %v1588
        %1616 = vmatprep.subr.mxu0 0.0
        %1617 = vmatpush1.msra.mxu0 %v1587
        %1618 = vmatprep.subr.mxu0 0.0
        %1619 = vmatpush1.msra.mxu0 %v1586
        %1620 = vmatprep.subr.mxu0 0.0
        %1621 = vmatpush1.msra.mxu0 %v1585
        %1622 = vmatprep.subr.mxu0 0.0
        %1623 = vmatpush1.msra.mxu0 %v1584
        %1624 = vmatprep.subr.mxu0 0.0
        %1625 = vmatpush2.msra.mxu0 0.0
        %1626 = vmatprep.subr.mxu0 0.0
        %1627 = vmatpush2.msra.mxu0 0.0
        %1628 = vmatprep.subr.mxu0 0.0
        %1629 = vmatpush2.msra.mxu0 0.0
        %1630 = vmatprep.subr.mxu0 0.0
        %1631 = vmatpush2.msra.mxu0 0.0
        %1632 = vmatprep.subr.mxu0 0.0
        %1633 = vmatpush2.msra.mxu0 0.0
        %1634 = vmatprep.subr.mxu0 0.0
        %1635 = vmatpush2.msra.mxu0 0.0
        %1636 = vmatprep.subr.mxu0 0.0
        %1637 = vmatpush2.msra.mxu0 0.0
        %1638 = vmatprep.subr.mxu0 0.0
        %1639 = vmatpush2.msra.mxu0 0.0
        %1640 = vmatprep.subr.mxu0 0.0
        %1641 = vmatpush2.msra.mxu0 0.0
        %1642 = vmatprep.subr.mxu0 0.0
        %1643 = vmatpush2.msra.mxu0 0.0
        %1644 = vmatprep.subr.mxu0 0.0
        %1645 = vmatpush2.msra.mxu0 0.0
        %1646 = vmatprep.subr.mxu0 0.0
        %1647 = vmatpush2.msra.mxu0 0.0
        %1648 = vmatprep.subr.mxu0 0.0
        %1649 = vmatpush2.msra.mxu0 0.0
        %1650 = vmatprep.subr.mxu0 0.0
        %1651 = vmatpush2.msra.mxu0 0.0
        %1652 = vmatprep.subr.mxu0 0.0
        %1653 = vmatpush2.msra.mxu0 0.0
        %1654 = vmatprep.subr.mxu0 0.0
        %1655 = vmatpush2.msra.mxu0 0.0
        %1656 = vmatprep.mubr.f32.mxu0 0.0
        %1657 = vmatmul.mubr.f32.gmra.mxu0 %v1232
        %v1658 = vpop.f32.mrf.mxu0
        %v1659 = vadd.f32 0.0, %v1658
        %v1660 = vpop.f32.mrf.mxu0
        %1661 = vdwg.mxu0
        %1662 = vmatprep.subr.mxu0 0.0
        %1663 = vmatpush1.msra.mxu0 0.0
        %1664 = vmatprep.subr.mxu0 0.0
        %1665 = vmatpush1.msra.mxu0 0.0
        %1666 = vmatprep.subr.mxu0 0.0
        %1667 = vmatpush1.msra.mxu0 0.0
        %1668 = vmatprep.subr.mxu0 0.0
        %1669 = vmatpush1.msra.mxu0 0.0
        %1670 = vmatprep.subr.mxu0 0.0
        %1671 = vmatpush1.msra.mxu0 0.0
        %1672 = vmatprep.subr.mxu0 0.0
        %1673 = vmatpush1.msra.mxu0 0.0
        %1674 = vmatprep.subr.mxu0 0.0
        %1675 = vmatpush1.msra.mxu0 0.0
        %1676 = vmatprep.subr.mxu0 0.0
        %1677 = vmatpush1.msra.mxu0 0.0
        %1678 = vmatprep.subr.mxu0 0.0
        %1679 = vmatpush1.msra.mxu0 %v1583
        %1680 = vmatprep.subr.mxu0 0.0
        %1681 = vmatpush1.msra.mxu0 %v1582
        %1682 = vmatprep.subr.mxu0 0.0
        %1683 = vmatpush1.msra.mxu0 %v1581
        %1684 = vmatprep.subr.mxu0 0.0
        %1685 = vmatpush1.msra.mxu0 %v1580
        %1686 = vmatprep.subr.mxu0 0.0
        %1687 = vmatpush1.msra.mxu0 %v1579
        %1688 = vmatprep.subr.mxu0 0.0
        %1689 = vmatpush1.msra.mxu0 %v1578
        %1690 = vmatprep.subr.mxu0 0.0
        %1691 = vmatpush1.msra.mxu0 %v1577
        %1692 = vmatprep.subr.mxu0 0.0
        %1693 = vmatpush1.msra.mxu0 %v1576
        %1694 = vmatprep.subr.mxu0 0.0
        %1695 = vmatpush2.msra.mxu0 0.0
        %1696 = vmatprep.subr.mxu0 0.0
        %1697 = vmatpush2.msra.mxu0 0.0
        %1698 = vmatprep.subr.mxu0 0.0
        %1699 = vmatpush2.msra.mxu0 0.0
        %1700 = vmatprep.subr.mxu0 0.0
        %1701 = vmatpush2.msra.mxu0 0.0
        %1702 = vmatprep.subr.mxu0 0.0
        %1703 = vmatpush2.msra.mxu0 0.0
        %1704 = vmatprep.subr.mxu0 0.0
        %1705 = vmatpush2.msra.mxu0 0.0
        %1706 = vmatprep.subr.mxu0 0.0
        %1707 = vmatpush2.msra.mxu0 0.0
        %1708 = vmatprep.subr.mxu0 0.0
        %1709 = vmatpush2.msra.mxu0 0.0
        %1710 = vmatprep.subr.mxu0 0.0
        %1711 = vmatpush2.msra.mxu0 0.0
        %1712 = vmatprep.subr.mxu0 0.0
        %1713 = vmatpush2.msra.mxu0 0.0
        %1714 = vmatprep.subr.mxu0 0.0
        %1715 = vmatpush2.msra.mxu0 0.0
        %1716 = vmatprep.subr.mxu0 0.0
        %1717 = vmatpush2.msra.mxu0 0.0
        %1718 = vmatprep.subr.mxu0 0.0
        %1719 = vmatpush2.msra.mxu0 0.0
        %1720 = vmatprep.subr.mxu0 0.0
        %1721 = vmatpush2.msra.mxu0 0.0
        %1722 = vmatprep.subr.mxu0 0.0
        %1723 = vmatpush2.msra.mxu0 0.0
        %1724 = vmatprep.subr.mxu0 0.0
        %1725 = vmatpush2.msra.mxu0 0.0
        %1726 = vmatprep.mubr.f32.mxu0 0.0
        %1727 = vmatmul.mubr.f32.gmra.mxu0 %v1305
        %v1728 = vpop.f32.mrf.mxu0
        %v1729 = vadd.f32 %v1659, %v1728
        %v1730 = vpop.f32.mrf.mxu0
        %1731 = vdwg.mxu0
        %v1732 = vld [vmem:[#allocation15] sm:$0xff]
        %v1733 = vld [vmem:[#allocation15 + $0x8] sm:$0xff]
        %v1734 = vld [vmem:[#allocation15 + $0x10] sm:$0xff]
        %v1735 = vld [vmem:[#allocation15 + $0x18] sm:$0xff]
        %v1736 = vld [vmem:[#allocation15 + $0x20] sm:$0xff]
        %v1737 = vld [vmem:[#allocation15 + $0x28] sm:$0xff]
        %v1738 = vld [vmem:[#allocation15 + $0x30] sm:$0xff]
        %v1739 = vld [vmem:[#allocation15 + $0x38] sm:$0xff]
        %v1741 = vsel %vm1141, %v1572, 0
        %1743 = vmatprep.subr.mxu0 0.0
        %1744 = vmatpush1.msra.mxu0 0.0
        %1745 = vmatprep.subr.mxu0 0.0
        %1746 = vmatpush1.msra.mxu0 0.0
        %1747 = vmatprep.subr.mxu0 0.0
        %1748 = vmatpush1.msra.mxu0 0.0
        %1749 = vmatprep.subr.mxu0 0.0
        %1750 = vmatpush1.msra.mxu0 0.0
        %1751 = vmatprep.subr.mxu0 0.0
        %1752 = vmatpush1.msra.mxu0 0.0
        %1753 = vmatprep.subr.mxu0 0.0
        %1754 = vmatpush1.msra.mxu0 0.0
        %1755 = vmatprep.subr.mxu0 0.0
        %1756 = vmatpush1.msra.mxu0 0.0
        %1757 = vmatprep.subr.mxu0 0.0
        %1758 = vmatpush1.msra.mxu0 0.0
        %1759 = vmatprep.subr.mxu0 0.0
        %1760 = vmatpush1.msra.mxu0 %v1739
        %1761 = vmatprep.subr.mxu0 0.0
        %1762 = vmatpush1.msra.mxu0 %v1738
        %1763 = vmatprep.subr.mxu0 0.0
        %1764 = vmatpush1.msra.mxu0 %v1737
        %1765 = vmatprep.subr.mxu0 0.0
        %1766 = vmatpush1.msra.mxu0 %v1736
        %1767 = vmatprep.subr.mxu0 0.0
        %1768 = vmatpush1.msra.mxu0 %v1735
        %1769 = vmatprep.subr.mxu0 0.0
        %1770 = vmatpush1.msra.mxu0 %v1734
        %1771 = vmatprep.subr.mxu0 0.0
        %1772 = vmatpush1.msra.mxu0 %v1733
        %1773 = vmatprep.subr.mxu0 0.0
        %1774 = vmatpush1.msra.mxu0 %v1732
        %1775 = vmatprep.subr.mxu0 0.0
        %1776 = vmatpush2.msra.mxu0 0.0
        %1777 = vmatprep.subr.mxu0 0.0
        %1778 = vmatpush2.msra.mxu0 0.0
        %1779 = vmatprep.subr.mxu0 0.0
        %1780 = vmatpush2.msra.mxu0 0.0
        %1781 = vmatprep.subr.mxu0 0.0
        %1782 = vmatpush2.msra.mxu0 0.0
        %1783 = vmatprep.subr.mxu0 0.0
        %1784 = vmatpush2.msra.mxu0 0.0
        %1785 = vmatprep.subr.mxu0 0.0
        %1786 = vmatpush2.msra.mxu0 0.0
        %1787 = vmatprep.subr.mxu0 0.0
        %1788 = vmatpush2.msra.mxu0 0.0
        %1789 = vmatprep.subr.mxu0 0.0
        %1790 = vmatpush2.msra.mxu0 0.0
        %1791 = vmatprep.subr.mxu0 0.0
        %1792 = vmatpush2.msra.mxu0 0.0
        %1793 = vmatprep.subr.mxu0 0.0
        %1794 = vmatpush2.msra.mxu0 0.0
        %1795 = vmatprep.subr.mxu0 0.0
        %1796 = vmatpush2.msra.mxu0 0.0
        %1797 = vmatprep.subr.mxu0 0.0
        %1798 = vmatpush2.msra.mxu0 0.0
        %1799 = vmatprep.subr.mxu0 0.0
        %1800 = vmatpush2.msra.mxu0 0.0
        %1801 = vmatprep.subr.mxu0 0.0
        %1802 = vmatpush2.msra.mxu0 0.0
        %1803 = vmatprep.subr.mxu0 0.0
        %1804 = vmatpush2.msra.mxu0 0.0
        %1805 = vmatprep.subr.mxu0 0.0
        %1806 = vmatpush2.msra.mxu0 0.0
        %1807 = vmatprep.mubr.f32.mxu0 0.0
        %1808 = vmatmul.mubr.f32.gmra.mxu0 %v1741
        %v1809 = vpop.f32.mrf.mxu0
        %v1810 = vadd.f32 0.0, %v1809
        %v1811 = vpop.f32.mrf.mxu0
        %1812 = vdwg.mxu0
        %v1813 = vadd.f32 %v1729, %v1810
        %v1814 = vld [vmem:[#allocation17] sm:$0x1]
        %v1816 = vlaneseq
        %v1817 = vshrl.u32 %v1816, 7
        %v1818 = vsub.s32 0, %v1817
        %v1819 = vrot.slane %v1814, %v1818
        %v1821 = vadd.f32 %v1813, %v1819
        %v1822 = vmax.f32 %v1821, 0.0
        %v1823 = vpack.c.bf16 %v1822, %v1822
        %v1824 = vld [vmem:[%s16] sm:$0xff]
        %v1825 = vld [vmem:[%s16 + $0x8] sm:$0xff]
        %v1826 = vld [vmem:[%s16 + $0x10] sm:$0xff]
        %v1827 = vld [vmem:[%s16 + $0x18] sm:$0xff]
        %v1828 = vld [vmem:[%s16 + $0x20] sm:$0xff]
        %v1829 = vld [vmem:[%s16 + $0x28] sm:$0xff]
        %v1830 = vld [vmem:[%s16 + $0x30] sm:$0xff]
        %v1831 = vld [vmem:[%s16 + $0x38] sm:$0xff]
        %v1832 = vld [vmem:[%s16 + $0x40] sm:$0xff]
        %v1833 = vld [vmem:[%s16 + $0x48] sm:$0xff]
        %v1834 = vld [vmem:[%s16 + $0x50] sm:$0xff]
        %v1835 = vld [vmem:[%s16 + $0x58] sm:$0xff]
        %v1836 = vld [vmem:[%s16 + $0x60] sm:$0xff]
        %v1837 = vld [vmem:[%s16 + $0x68] sm:$0xff]
        %v1838 = vld [vmem:[%s16 + $0x70] sm:$0xff]
        %v1839 = vld [vmem:[%s16 + $0x78] sm:$0xff]
        %v1840 = vld [vmem:[%s17] sm:$0x3]
        %v1842 = vlaneseq
        %v1843 = vshrl.u32 %v1842, 7
        %v1844 = vsub.s32 0, %v1843
        %v1845 = vrot.slane %v1840, %v1844
        %v1846 = vlaneseq
        %v1847 = vshrl.u32 %v1846, 7
        %v1848 = vsub.s32 1, %v1847
        %v1849 = vrot.slane %v1840, %v1848
        %v1868 = vunpack.c.l.b16 %v1824
        %v1869 = vunpack.c.h.b16 %v1824
        %v1870 = vunpack.c.l.b16 %v1825
        %v1871 = vunpack.c.h.b16 %v1825
        %v1872 = vunpack.c.l.b16 %v1826
        %v1873 = vunpack.c.h.b16 %v1826
        %v1874 = vunpack.c.l.b16 %v1827
        %v1875 = vunpack.c.h.b16 %v1827
        %v1876 = vunpack.c.l.b16 %v1828
        %v1877 = vunpack.c.h.b16 %v1828
        %v1878 = vunpack.c.l.b16 %v1829
        %v1879 = vunpack.c.h.b16 %v1829
        %v1880 = vunpack.c.l.b16 %v1830
        %v1881 = vunpack.c.h.b16 %v1830
        %v1882 = vunpack.c.l.b16 %v1831
        %v1883 = vunpack.c.h.b16 %v1831
        %v1884 = vunpack.c.l.b16 %v1832
        %v1885 = vunpack.c.h.b16 %v1832
        %v1886 = vunpack.c.l.b16 %v1833
        %v1887 = vunpack.c.h.b16 %v1833
        %v1888 = vunpack.c.l.b16 %v1834
        %v1889 = vunpack.c.h.b16 %v1834
        %v1890 = vunpack.c.l.b16 %v1835
        %v1891 = vunpack.c.h.b16 %v1835
        %v1892 = vunpack.c.l.b16 %v1836
        %v1893 = vunpack.c.h.b16 %v1836
        %v1894 = vunpack.c.l.b16 %v1837
        %v1895 = vunpack.c.h.b16 %v1837
        %v1896 = vunpack.c.l.b16 %v1838
        %v1897 = vunpack.c.h.b16 %v1838
        %v1898 = vunpack.c.l.b16 %v1839
        %v1899 = vunpack.c.h.b16 %v1839
        %v1900 = vpack.c.b16 %v1870, %v1868
        %v1901 = vpack.c.b16 %v1871, %v1869
        %v1902 = vpack.c.b16 %v1874, %v1872
        %v1903 = vpack.c.b16 %v1875, %v1873
        %v1904 = vpack.c.b16 %v1878, %v1876
        %v1905 = vpack.c.b16 %v1879, %v1877
        %v1906 = vpack.c.b16 %v1882, %v1880
        %v1907 = vpack.c.b16 %v1883, %v1881
        %v1908 = vpack.c.b16 %v1886, %v1884
        %v1909 = vpack.c.b16 %v1887, %v1885
        %v1910 = vpack.c.b16 %v1890, %v1888
        %v1911 = vpack.c.b16 %v1891, %v1889
        %v1912 = vpack.c.b16 %v1894, %v1892
        %v1913 = vpack.c.b16 %v1895, %v1893
        %v1914 = vpack.c.b16 %v1898, %v1896
        %v1915 = vpack.c.b16 %v1899, %v1897
        %1932 = vmatprep.subr.bf16.mxu0 %v1915
        %1933 = vmatpush1.bf16.msra.mxu0 %v1914
        %1934 = vmatprep.subr.bf16.mxu0 %v1913
        %1935 = vmatpush1.bf16.msra.mxu0 %v1912
        %1936 = vmatprep.subr.bf16.mxu0 %v1911
        %1937 = vmatpush1.bf16.msra.mxu0 %v1910
        %1938 = vmatprep.subr.bf16.mxu0 %v1909
        %1939 = vmatpush1.bf16.msra.mxu0 %v1908
        %1940 = vmatprep.subr.bf16.mxu0 %v1907
        %1941 = vmatpush1.bf16.msra.mxu0 %v1906
        %1942 = vmatprep.subr.bf16.mxu0 %v1905
        %1943 = vmatpush1.bf16.msra.mxu0 %v1904
        %1944 = vmatprep.subr.bf16.mxu0 %v1903
        %1945 = vmatpush1.bf16.msra.mxu0 %v1902
        %1946 = vmatprep.subr.bf16.mxu0 %v1901
        %1947 = vmatpush1.bf16.msra.mxu0 %v1900
        %1948 = vmatprep.subr.bf16.mxu0 0
        %1949 = vmatpush2.bf16.msra.mxu0 0
        %1950 = vmatprep.subr.bf16.mxu0 0
        %1951 = vmatpush2.bf16.msra.mxu0 0
        %1952 = vmatprep.subr.bf16.mxu0 0
        %1953 = vmatpush2.bf16.msra.mxu0 0
        %1954 = vmatprep.subr.bf16.mxu0 0
        %1955 = vmatpush2.bf16.msra.mxu0 0
        %1956 = vmatprep.subr.bf16.mxu0 0
        %1957 = vmatpush2.bf16.msra.mxu0 0
        %1958 = vmatprep.subr.bf16.mxu0 0
        %1959 = vmatpush2.bf16.msra.mxu0 0
        %1960 = vmatprep.subr.bf16.mxu0 0
        %1961 = vmatpush2.bf16.msra.mxu0 0
        %1962 = vmatprep.subr.bf16.mxu0 0
        %1963 = vmatpush2.bf16.msra.mxu0 0
        %1964 = vmatprep.mubr.bf16.mxu0 0
        %1965 = vmatmul.mubr.bf16.gmra.mxu0 %v1823
        %v1966 = vpop.f32.mrf.mxu0
        %v1967 = vadd.f32 %v1845, %v1966
        %v1968 = vpop.f32.mrf.mxu0
        %v1969 = vadd.f32 %v1849, %v1968
        %v1970 = vpop.f32.mrf.mxu0
        %v1971 = vpop.f32.mrf.mxu0
        %1972 = vdwg.mxu0
        %v1973 = vmul.f32 %v1967, %v1124
        %v1974 = vmul.f32 %v1969, %v1125
        %v1975 = vmax.f32 %v1973, %v1974
        %1976 = vmax.xlane.f32.xlu0 %v1975
        %v1977 = vpop.xlane.xlu0 %1976
        %v1978 = vadd.s32 %v1479, 128
        %vm1979 = vcmp.eq.f32.partialorder %v1973, %v1977
        %vm1980 = vcmp.eq.f32.partialorder %v1974, %v1977
        %v1981 = vsel %vm1979, %v1479, 256
        %v1982 = vsel %vm1980, %v1978, 256
        %vm1983 = vcmp.lt.s32.totalorder %v1981, %v1982
        %v1984 = vsel %vm1983, %v1981, %v1982
        %v1985 = vand.u32 %v1984, 65535
        %v1986 = vshra.s32 %v1984, 16
        %v1987 = vcvt.s32.f32 %v1985
        %v1988 = vcvt.s32.f32 %v1986
        %1989 = vmin.xlane.f32.xlu0 %v1988
        %v1990 = vpop.xlane.xlu0 %1989
        %vm1991 = vcmp.eq.f32.partialorder %v1988, %v1990
        %v1992 = vsel %vm1991, %v1987, inf
        %1993 = vmin.xlane.f32.xlu0 %v1992
        %v1994 = vpop.xlane.xlu0 %1993
        %v1995 = vcvt.f32.s32 %v1994
        %v1996 = vcvt.f32.s32 %v1990
        %v1997 = vshll.u32 %v1996, 16
        %v1998 = vadd.s32 %v1997, %v1995
        %vm1999 = vcmask 7168
        %2000 = vst.msk [vmem:[%s777] sm:$0xff] %vm1999, %v1998
        %vm2001 = vcmp.eq.s32.totalorder %v1479, %v1998
        %vm2002 = vcmp.eq.s32.totalorder %v1978, %v1998
        %v2003 = vsel %vm2001, 1, 0
        %v2004 = vsel %vm2002, 1, 0
        %v2005 = vcvt.s32.f32 %v2003
        %v2006 = vcvt.s32.f32 %v2004
        %2007 = vst [vmem:[#allocation3] sm:$0xff] %v2005
        %2008 = vst [vmem:[#allocation3 + $0x8] sm:$0xff] %v2006
        %p2009 = scmp.lt.s32.totalorder %s39, 3
        %s2010 = scalar_select %p2009, %s39, 3
        %s2011 = smul.addr %s2010, 8
        %s2012 = scalar_lea.vmem %s20, %s2011
        %p2013 = scmp.lt.s32.totalorder %s39, 3
        %s2014 = scalar_select %p2013, %s39, 3
        %s2015 = smul.addr %s2014, 8
        %s2016 = scalar_lea.vmem %s21, %s2015
        // Predicated region
        $region145: #{forward.1} parent=99 // pred_check
          %p2017 = pneg %p477
        $region146: #{forward.1} parent=99 // pred_check_branch
          %2019 = sbr.rel (%p2017) target = $region148
        $region147: #{forward.1} parent=99 // pred_region
          _
        $region148: #{forward.1} parent=99 // pred_fallthru
          _
        // Predicated region
        $region149: #{forward.1} parent=99 // pred_check
          %p2020 = pneg %p503
        $region150: #{forward.1} parent=99 // pred_check_branch
          %2022 = sbr.rel (%p2020) target = $region152
        $region151: #{forward.1} parent=99 // pred_region
          _
        $region152: #{forward.1} parent=99 // pred_fallthru
          _
      $region100: #{forward.1} parent=5 // pred_fallthru
        _
      %p2023 = scmp.le.s32.totalorder 2, %s34
      // Predicated region
      $region153: #{forward.1} parent=5 // pred_check
        %p2024 = pneg %p2023
      $region154: #{forward.1} parent=5 // pred_check_branch
        %2026 = sbr.rel (%p2024) target = $region156
      $region155: #{forward.1} parent=5 // pred_region
        %s2027 = ssub.s32 %s34, 2
        // Predicated region
        $region157: #{forward.1} parent=155 // pred_check
          %p2028 = pneg %p483
        $region158: #{forward.1} parent=155 // pred_check_branch
          %2030 = sbr.rel (%p2028) target = $region160
        $region159: #{forward.1} parent=155 // pred_region
          %p2031 = scmp.lt.s32.totalorder %s40, 3
          %s2032 = scalar_select %p2031, %s40, 3
          %s2033 = smul.addr %s2032, 8
          %s2034 = scalar_lea.vmem %s20, %s2033
        $region160: #{forward.1} parent=155 // pred_fallthru
          _
        // Predicated region
        $region161: #{forward.1} parent=155 // pred_check
          %p2035 = pneg %p509
        $region162: #{forward.1} parent=155 // pred_check_branch
          %2037 = sbr.rel (%p2035) target = $region164
        $region163: #{forward.1} parent=155 // pred_region
          %p2038 = scmp.lt.s32.totalorder %s40, 3
          %s2039 = scalar_select %p2038, %s40, 3
          %s2040 = smul.addr %s2039, 8
          %s2041 = scalar_lea.vmem %s21, %s2040
        $region164: #{forward.1} parent=155 // pred_fallthru
          _
      $region156: #{forward.1} parent=5 // pred_fallthru
        _
    $region6: #{forward.1} parent=1 // loop_footer
      %s38 = sadd.s32 1, %s34
    $region7: #{forward.1} parent=1 // loop_footer_branch
      %33 = sbr.rel target = $region3
    $region8: #{forward.1} parent=1 // loop_exit
      _
    %2042 = vsyncpa [#allocation5], 1
    %s2043 = scalar_lea.sflag [#allocation5], 1
    %2044 = vsyncpa %s2043, 1
    %2045 = vsyncpa [#allocation7], 1
    %2046 = vsyncpa [#allocation10], 1
    %2047 = vsyncpa [#allocation13], 1
    %2048 = vsyncpa [#allocation16], 1
    %2049 = vsyncpa [#allocation19], 1

</llo_original>
